<compile_context>
chip_gen: v6e
topology: v6e:2x2x1
jax: 0.10.0
libtpu: 0.0.40
codegen_flags: <defaults>
</compile_context>

<pallas_src>
import jax
import jax.numpy as jnp
from jax import lax
from jax.experimental import pallas as pl
from jax.experimental.pallas import tpu as pltpu

# ----------------------------- model hyper-params -----------------------------
B = 2            # batch
L = 8            # sequence length
D = 32           # hidden dim ("self.dim")
DF = 64          # FFN hidden dim of the synthetic encoder layer
LOW = 16         # args.mapping_lower_dim
N_CLASSES = 6    # IEMOCAP
N_ANCHORS = 6    # emo_anchor rows
VOCAB = 64       # synthetic embedding-table size (real model: 50265 + 256)
PAD_VALUE = 1    # args.pad_value (RoBERTa pad id)
MASK_VALUE = 50265
EPS = 1e-8       # self.eps / F.cosine_similarity eps
LN_EPS_ENC = 1e-12
LN_EPS_MAP = 1e-5

OUT_W = 128      # lane-dense packed output width
# packed output column layout (all offsets multiples of 8)
_OFF_MO = 0                    # mask_outputs  cols  0..31
_OFF_MAP = _OFF_MO + D         # mapped        cols 32..47
_OFF_FEAT = _OFF_MAP + LOW     # feature       cols 48..53
_OFF_SCORE = 56                # anchor scores cols 56..61

# --------------------- packed parameter slab layout (rows) --------------------
R_EMB = 0                      # (VOCAB, D)     embedding table
R_WQKV = R_EMB + VOCAB         # 64  (D, 3D)    fused Wq|Wk|Wv (1/sqrt(D) folded into Wq)
R_WO = R_WQKV + D              # 96  (D, D)
R_FFN1 = R_WO + D              # 128 (D, DF)
R_FFN2 = R_FFN1 + D            # 160 (DF, D)
R_MAPPRED = R_FFN2 + DF        # 224 (D, D+C)   fused [map_w1 | pred_w]
R_MAPW2 = R_MAPPRED + D        # 256 (D, LOW)
R_ANCH = R_MAPW2 + D           # 288 (A, D)     emo anchors
R_VEC = 296                    # 12 single-row vectors (biases / LN params)
N_VEC = 12
SLAB_ROWS = 312                # padded to a multiple of 8

# vector-row indices inside the R_VEC block
V_BQKV, V_BO, V_G1, V_BE1, V_B1, V_B2, V_G2, V_BE2, V_BMP, V_MG, V_MBE, V_MB2 = range(N_VEC)


# ------------------------------- fused kernel ---------------------------------
def fused_kernel(sent_ref, slab_ref, out_ref):
    sent = sent_ref[...]                                          # (B, L) int32

    # ---- static slices of the single packed parameter slab (one DMA total) ----
    emb = slab_ref[R_EMB:R_EMB + VOCAB, 0:D]
    wqkv = slab_ref[R_WQKV:R_WQKV + D, 0:3 * D]
    wo = slab_ref[R_WO:R_WO + D, 0:D]
    w1 = slab_ref[R_FFN1:R_FFN1 + D, 0:DF]
    w2 = slab_ref[R_FFN2:R_FFN2 + DF, 0:D]
    wmp = slab_ref[R_MAPPRED:R_MAPPRED + D, 0:D + N_CLASSES]
    wm2 = slab_ref[R_MAPW2:R_MAPW2 + D, 0:LOW]
    anc = slab_ref[R_ANCH:R_ANCH + N_ANCHORS, 0:D]
    vec = slab_ref[R_VEC:R_VEC + N_VEC, :]                        # (12, 128)
    bqkv = vec[V_BQKV:V_BQKV + 1, 0:3 * D]
    bo = vec[V_BO:V_BO + 1, 0:D]
    g1 = vec[V_G1:V_G1 + 1, 0:D]
    be1 = vec[V_BE1:V_BE1 + 1, 0:D]
    b1 = vec[V_B1:V_B1 + 1, 0:DF]
    b2 = vec[V_B2:V_B2 + 1, 0:D]
    g2 = vec[V_G2:V_G2 + 1, 0:D]
    be2 = vec[V_BE2:V_BE2 + 1, 0:D]
    bmp = vec[V_BMP:V_BMP + 1, 0:D + N_CLASSES]
    mg = vec[V_MG:V_MG + 1, 0:D]
    mbe = vec[V_MBE:V_MBE + 1, 0:D]
    mb2 = vec[V_MB2:V_MB2 + 1, 0:LOW]

    # ---- embedding lookup as a one-hot matmul (no XLA gather, no activation DMA) ----
    tok = jnp.where(sent == MASK_VALUE, VOCAB - 1, sent)          # remap [MASK] id
    tok = jnp.clip(tok, 0, VOCAB - 1)
    vocab_iota = lax.broadcasted_iota(jnp.int32, (B, L, VOCAB), 2)
    onehot_tok = (vocab_iota == tok[:, :, None]).astype(jnp.float32)     # (B, L, V)
    xf = jnp.dot(onehot_tok.reshape(B * L, VOCAB), emb,
                 preferred_element_type=jnp.float32)                     # (B*L, D)

    # ---- synthetic 1-layer transformer encoder (registers only) ----
    qkv = jnp.dot(xf, wqkv, preferred_element_type=jnp.float32) + bqkv   # (B*L, 3D)
    q = qkv[:, 0:D]                       # 1/sqrt(D) already folded into Wq
    k = qkv[:, D:2 * D]
    v = qkv[:, 2 * D:3 * D]

    # additive attention bias from pad ids: (B, L)
    bias = jnp.where(sent == PAD_VALUE, jnp.float32(-1e9), jnp.float32(0.0))

    # per-batch score matmuls (static unroll, dot_general — no transposes),
    # then ONE stacked softmax pass over all rows
    s_rows = []
    for b in range(B):
        qb = q[b * L:(b + 1) * L, :]
        kb = k[b * L:(b + 1) * L, :]
        s_b = lax.dot_general(qb, kb, (((1,), (1,)), ((), ())),
                              preferred_element_type=jnp.float32)         # (L, L)
        s_rows.append(s_b + bias[b:b + 1, :])
    s = jnp.concatenate(s_rows, axis=0)                                   # (B*L, L)
    s = s - jnp.max(s, axis=-1, keepdims=True)
    p = jnp.exp(s)
    p = p / jnp.sum(p, axis=-1, keepdims=True)                            # exact softmax

    ctx_rows = []
    for b in range(B):
        ctx_rows.append(jnp.dot(p[b * L:(b + 1) * L, :], v[b * L:(b + 1) * L, :],
                                preferred_element_type=jnp.float32))
    ctx = jnp.concatenate(ctx_rows, axis=0)                               # (B*L, D)

    attn = jnp.dot(ctx, wo, preferred_element_type=jnp.float32) + bo

    # residual + LayerNorm 1
    h = xf + attn
    mu = jnp.mean(h, axis=-1, keepdims=True)
    var = jnp.mean((h - mu) ** 2, axis=-1, keepdims=True)
    h = (h - mu) * lax.rsqrt(var + LN_EPS_ENC) * g1 + be1

    # FFN (ReLU) + residual + LayerNorm 2
    f = jnp.maximum(jnp.dot(h, w1, preferred_element_type=jnp.float32) + b1, 0.0)
    f = jnp.dot(f, w2, preferred_element_type=jnp.float32) + b2
    h2 = h + f
    mu2 = jnp.mean(h2, axis=-1, keepdims=True)
    var2 = jnp.mean((h2 - mu2) ** 2, axis=-1, keepdims=True)
    enc = (h2 - mu2) * lax.rsqrt(var2 + LN_EPS_ENC) * g2 + be2            # (B*L, D)

    # ---- [MASK]-row gather via one-hot selection matmul (first occurrence, 0 if none) ----
    lane_iota = lax.broadcasted_iota(jnp.int32, (B, L), 1)
    is_mask = sent == MASK_VALUE
    masked_pos = jnp.where(is_mask, lane_iota, L).astype(jnp.float32)
    pos = jnp.min(masked_pos, axis=1, keepdims=True)                      # (B, 1)
    pos = jnp.where(pos >= jnp.float32(L), jnp.float32(0.0), pos)         # torch .max(1)[1]
    pos_i = pos.astype(jnp.int32)

    row_iota = lax.broadcasted_iota(jnp.int32, (B, B * L), 0)
    col_iota = lax.broadcasted_iota(jnp.int32, (B, B * L), 1)
    sel = (col_iota == row_iota * L + pos_i).astype(jnp.float32)          # (B, B*L)
    mask_outputs = jnp.dot(sel, enc, preferred_element_type=jnp.float32)  # (B, D)

    # combined matrix = [mask_outputs; anchors] so map_function runs once
    comb = jnp.concatenate([mask_outputs, anc], axis=0)                   # (B+A, D)

    # ---- map_function (Linear -> LN -> ReLU -> Linear) + fused predictor ----
    mh_all = jnp.dot(comb, wmp, preferred_element_type=jnp.float32) + bmp  # (B+A, D+C)
    feature = mh_all[0:B, D:D + N_CLASSES]        # predictor(mask_outputs); dropout=eval id
    mh = mh_all[:, 0:D]
    mmu = jnp.mean(mh, axis=-1, keepdims=True)
    mvar = jnp.mean((mh - mmu) ** 2, axis=-1, keepdims=True)
    mh = (mh - mmu) * lax.rsqrt(mvar + LN_EPS_MAP) * mg + mbe
    mh = jnp.maximum(mh, 0.0)
    mapped_all = jnp.dot(mh, wm2, preferred_element_type=jnp.float32) + mb2  # (B+A, LOW)
    mapped_m = mapped_all[0:B, :]
    mapped_a = mapped_all[B:B + N_ANCHORS, :]

    # ---- score_func: (1 + cosine)/2 + eps  (per-vector eps clamp, torch semantics) ----
    inv_m = lax.rsqrt(jnp.maximum(jnp.sum(mapped_m * mapped_m, axis=-1, keepdims=True),
                                  EPS * EPS))                             # (B, 1)
    inv_a = lax.rsqrt(jnp.maximum(jnp.sum(mapped_a * mapped_a, axis=-1, keepdims=True),
                                  EPS * EPS))                             # (A, 1)
    cos = lax.dot_general(mapped_m * inv_m, mapped_a * inv_a,
                          (((1,), (1,)), ((), ())),
                          preferred_element_type=jnp.float32)             # (B, A)
    scores = (1.0 + cos) * 0.5 + EPS

    # ---- single lane-dense full-tile writeback (one unmasked store) ----
    packed = jnp.concatenate([
        mask_outputs,                                                     # cols  0..31
        mapped_m,                                                         # cols 32..47
        feature,                                                          # cols 48..53
        jnp.zeros((B, _OFF_SCORE - (_OFF_FEAT + N_CLASSES)), jnp.float32),
        scores,                                                           # cols 56..61
        jnp.zeros((B, OUT_W - (_OFF_SCORE + N_ANCHORS)), jnp.float32),
    ], axis=1)
    out_ref[...] = packed


# ------------------------------ JAX wrapper ------------------------------------
@jax.jit
def clmodel_forward(sentences, pslab):
    """Returns (feature, mask_mapped_outputs, mask_outputs, anchor_scores)."""
    sentences = sentences.astype(jnp.int32)
    packed = pl.pallas_call(
        fused_kernel,
        out_shape=jax.ShapeDtypeStruct((B, OUT_W), jnp.float32),
        grid=(1,),
        in_specs=[
            pl.BlockSpec((B, L), lambda i: (0, 0)),                # raw token ids
            pl.BlockSpec((SLAB_ROWS, OUT_W), lambda i: (0, 0)),    # packed param slab (1 DMA)
        ],
        out_specs=pl.BlockSpec((B, OUT_W), lambda i: (0, 0)),
        compiler_params=pltpu.CompilerParams(dimension_semantics=("arbitrary",)),
    )(sentences, pslab)

    mask_outputs = packed[:, _OFF_MO:_OFF_MO + D]
    mapped = packed[:, _OFF_MAP:_OFF_MAP + LOW]
    feature = packed[:, _OFF_FEAT:_OFF_FEAT + N_CLASSES]
    anchor_scores = packed[:, _OFF_SCORE:_OFF_SCORE + N_ANCHORS]
    return feature, mapped, mask_outputs, anchor_scores


# ------------------------------ parameters -------------------------------------
def init_params(key):
    def dense(k, shape, scale):
        return (jax.random.normal(k, shape, jnp.float32) * scale).astype(jnp.float32)

    ks = jax.random.split(key, 12)
    s = lambda fan_in: 1.0 / jnp.sqrt(jnp.float32(fan_in))
    return {
        "emb": dense(ks[0], (VOCAB, D), 0.05),
        "wq": dense(ks[1], (D, D), s(D)),
        "wk": dense(ks[2], (D, D), s(D)),
        "wv": dense(ks[3], (D, D), s(D)),
        "bqkv": jnp.zeros((1, 3 * D), jnp.float32),
        "wo": dense(ks[4], (D, D), s(D)), "bo": jnp.zeros((1, D), jnp.float32),
        "ln1_g": jnp.ones((1, D), jnp.float32), "ln1_b": jnp.zeros((1, D), jnp.float32),
        "ffn_w1": dense(ks[5], (D, DF), s(D)), "ffn_b1": jnp.zeros((1, DF), jnp.float32),
        "ffn_w2": dense(ks[6], (DF, D), s(DF)), "ffn_b2": jnp.zeros((1, D), jnp.float32),
        "ln2_g": jnp.ones((1, D), jnp.float32), "ln2_b": jnp.zeros((1, D), jnp.float32),
        "pred_w": dense(ks[7], (D, N_CLASSES), s(D)),
        "pred_b": jnp.zeros((1, N_CLASSES), jnp.float32),
        "map_w1": dense(ks[8], (D, D), s(D)), "map_b1": jnp.zeros((1, D), jnp.float32),
        "map_ln_g": jnp.ones((1, D), jnp.float32),
        "map_ln_b": jnp.zeros((1, D), jnp.float32),
        "map_w2": dense(ks[9], (D, LOW), s(D)), "map_b2": jnp.zeros((1, LOW), jnp.float32),
        "emo_anchor": dense(ks[10], (N_ANCHORS, D), 1.0),
    }


def pack_params(p):
    """Pack every weight/bias/anchor into ONE (SLAB_ROWS, 128) f32 slab (built once)."""
    def put(slab, row, mat):
        mat = jnp.asarray(mat, jnp.float32)
        if mat.ndim == 1:
            mat = mat[None, :]
        return slab.at[row:row + mat.shape[0], 0:mat.shape[1]].set(mat)

    scale = 1.0 / jnp.sqrt(jnp.float32(D))                      # attention scale -> Wq
    wqkv = jnp.concatenate([p["wq"] * scale, p["wk"], p["wv"]], axis=1)   # (D, 3D)
    wmp = jnp.concatenate([p["map_w1"], p["pred_w"]], axis=1)             # (D, D+C)
    bmp = jnp.concatenate([p["map_b1"], p["pred_b"]], axis=1)             # (1, D+C)

    slab = jnp.zeros((SLAB_ROWS, OUT_W), jnp.float32)
    slab = put(slab, R_EMB, p["emb"])
    slab = put(slab, R_WQKV, wqkv)
    slab = put(slab, R_WO, p["wo"])
    slab = put(slab, R_FFN1, p["ffn_w1"])
    slab = put(slab, R_FFN2, p["ffn_w2"])
    slab = put(slab, R_MAPPRED, wmp)
    slab = put(slab, R_MAPW2, p["map_w2"])
    slab = put(slab, R_ANCH, p["emo_anchor"])
    slab = put(slab, R_VEC + V_BQKV, p["bqkv"])
    slab = put(slab, R_VEC + V_BO, p["bo"])
    slab = put(slab, R_VEC + V_G1, p["ln1_g"])
    slab = put(slab, R_VEC + V_BE1, p["ln1_b"])
    slab = put(slab, R_VEC + V_B1, p["ffn_b1"])
    slab = put(slab, R_VEC + V_B2, p["ffn_b2"])
    slab = put(slab, R_VEC + V_G2, p["ln2_g"])
    slab = put(slab, R_VEC + V_BE2, p["ln2_b"])
    slab = put(slab, R_VEC + V_BMP, bmp)
    slab = put(slab, R_VEC + V_MG, p["map_ln_g"])
    slab = put(slab, R_VEC + V_MBE, p["map_ln_b"])
    slab = put(slab, R_VEC + V_MB2, p["map_b2"])
    return slab


if __name__ == "__main__":
    key = jax.random.PRNGKey(0)
    params = init_params(key)
    pslab = pack_params(params)          # built ONCE, outside the jitted forward

    # deterministic token ids: each row has one [MASK] token and trailing pads.
    sentences = jnp.array(
        [[5, 7, 12, MASK_VALUE, 9, PAD_VALUE, PAD_VALUE, PAD_VALUE],
         [3, MASK_VALUE, 8, 22, 6, 10, PAD_VALUE, PAD_VALUE]],
        dtype=jnp.int32,
    )
    assert sentences.shape == (B, L)

    feature, mapped, mask_outputs, anchor_scores = clmodel_forward(sentences, pslab)
    jax.block_until_ready((feature, mapped, mask_outputs, anchor_scores))

    assert feature.shape == (B, N_CLASSES)
    assert mapped.shape == (B, LOW)
    assert mask_outputs.shape == (B, D)
    assert anchor_scores.shape == (B, N_ANCHORS)
    assert bool(jnp.all(jnp.isfinite(feature)))
    assert bool(jnp.all(jnp.isfinite(mask_outputs)))
    assert bool(jnp.all(anchor_scores > 0.0)) and bool(jnp.all(anchor_scores <= 1.0 + 1e-6))
    print("KERNEL_OK")
</pallas_src>

<mosaic_0001>
module attributes {stable_mosaic.version = 11 : i64} {
  func.func @fused_kernel(%arg0: i32, %arg1: memref<2x8xi32, #tpu.memory_space<vmem>>, %arg2: memref<312x128xf32, #tpu.memory_space<vmem>>, %arg3: memref<2x128xf32, #tpu.memory_space<vmem>>) attributes {dimension_semantics = [#tpu.dimension_semantics<arbitrary>], iteration_bounds = array<i64: 1>, scalar_prefetch = 0 : i64, scratch_operands = 0 : i64, tpu.core_type = #tpu.core_type<tc>, window_params = [{pipeline_mode = #tpu.pipeline_mode<synchronous>, transform_indices = @transform_0, window_bounds = array<i64: 2, 8>}, {pipeline_mode = #tpu.pipeline_mode<synchronous>, transform_indices = @transform_1, window_bounds = array<i64: 312, 128>}, {pipeline_mode = #tpu.pipeline_mode<synchronous>, transform_indices = @transform_2, window_bounds = array<i64: 2, 128>}]} {
    %c0 = arith.constant 0 : index
    %c0_0 = arith.constant 0 : index
    %0 = vector.load %arg1[%c0, %c0_0] : memref<2x8xi32, #tpu.memory_space<vmem>>, vector<2x8xi32>
    %c0_1 = arith.constant 0 : index
    %c0_2 = arith.constant 0 : index
    %1 = vector.load %arg2[%c0_1, %c0_2] : memref<312x128xf32, #tpu.memory_space<vmem>>, vector<64x32xf32>
    %c64 = arith.constant 64 : index
    %c0_3 = arith.constant 0 : index
    %2 = vector.load %arg2[%c64, %c0_3] : memref<312x128xf32, #tpu.memory_space<vmem>>, vector<32x96xf32>
    %c96 = arith.constant 96 : index
    %c0_4 = arith.constant 0 : index
    %3 = vector.load %arg2[%c96, %c0_4] : memref<312x128xf32, #tpu.memory_space<vmem>>, vector<32x32xf32>
    %c128 = arith.constant 128 : index
    %c0_5 = arith.constant 0 : index
    %4 = vector.load %arg2[%c128, %c0_5] : memref<312x128xf32, #tpu.memory_space<vmem>>, vector<32x64xf32>
    %c160 = arith.constant 160 : index
    %c0_6 = arith.constant 0 : index
    %5 = vector.load %arg2[%c160, %c0_6] : memref<312x128xf32, #tpu.memory_space<vmem>>, vector<64x32xf32>
    %c224 = arith.constant 224 : index
    %c0_7 = arith.constant 0 : index
    %6 = vector.load %arg2[%c224, %c0_7] : memref<312x128xf32, #tpu.memory_space<vmem>>, vector<32x38xf32>
    %c256 = arith.constant 256 : index
    %c0_8 = arith.constant 0 : index
    %7 = vector.load %arg2[%c256, %c0_8] : memref<312x128xf32, #tpu.memory_space<vmem>>, vector<32x16xf32>
    %c288 = arith.constant 288 : index
    %c0_9 = arith.constant 0 : index
    %8 = vector.load %arg2[%c288, %c0_9] : memref<312x128xf32, #tpu.memory_space<vmem>>, vector<6x32xf32>
    %c296 = arith.constant 296 : index
    %c0_10 = arith.constant 0 : index
    %9 = vector.load %arg2[%c296, %c0_10] : memref<312x128xf32, #tpu.memory_space<vmem>>, vector<12x128xf32>
    %10 = vector.extract_strided_slice %9 {offsets = [0, 0], sizes = [1, 96], strides = [1, 1]} : vector<12x128xf32> to vector<1x96xf32>
    %11 = vector.extract_strided_slice %9 {offsets = [1, 0], sizes = [1, 32], strides = [1, 1]} : vector<12x128xf32> to vector<1x32xf32>
    %12 = vector.extract_strided_slice %9 {offsets = [2, 0], sizes = [1, 32], strides = [1, 1]} : vector<12x128xf32> to vector<1x32xf32>
    %13 = vector.extract_strided_slice %9 {offsets = [3, 0], sizes = [1, 32], strides = [1, 1]} : vector<12x128xf32> to vector<1x32xf32>
    %14 = vector.extract_strided_slice %9 {offsets = [4, 0], sizes = [1, 64], strides = [1, 1]} : vector<12x128xf32> to vector<1x64xf32>
    %15 = vector.extract_strided_slice %9 {offsets = [5, 0], sizes = [1, 32], strides = [1, 1]} : vector<12x128xf32> to vector<1x32xf32>
    %16 = vector.extract_strided_slice %9 {offsets = [6, 0], sizes = [1, 32], strides = [1, 1]} : vector<12x128xf32> to vector<1x32xf32>
    %17 = vector.extract_strided_slice %9 {offsets = [7, 0], sizes = [1, 32], strides = [1, 1]} : vector<12x128xf32> to vector<1x32xf32>
    %18 = vector.extract_strided_slice %9 {offsets = [8, 0], sizes = [1, 38], strides = [1, 1]} : vector<12x128xf32> to vector<1x38xf32>
    %19 = vector.extract_strided_slice %9 {offsets = [9, 0], sizes = [1, 32], strides = [1, 1]} : vector<12x128xf32> to vector<1x32xf32>
    %20 = vector.extract_strided_slice %9 {offsets = [10, 0], sizes = [1, 32], strides = [1, 1]} : vector<12x128xf32> to vector<1x32xf32>
    %21 = vector.extract_strided_slice %9 {offsets = [11, 0], sizes = [1, 16], strides = [1, 1]} : vector<12x128xf32> to vector<1x16xf32>
    %c50265_i32 = arith.constant 50265 : i32
    %22 = vector.broadcast %c50265_i32 : i32 to vector<2x8xi32>
    %23 = arith.cmpi eq, %0, %22 : vector<2x8xi32>
    %c63_i32 = arith.constant 63 : i32
    %24 = vector.broadcast %c63_i32 : i32 to vector<2x8xi32>
    %25 = arith.select %23, %24, %0 : vector<2x8xi1>, vector<2x8xi32>
    %c0_i32 = arith.constant 0 : i32
    %c63_i32_11 = arith.constant 63 : i32
    %26 = vector.broadcast %c0_i32 : i32 to vector<2x8xi32>
    %27 = arith.maxsi %26, %25 : vector<2x8xi32>
    %28 = vector.broadcast %c63_i32_11 : i32 to vector<2x8xi32>
    %29 = arith.minsi %28, %27 : vector<2x8xi32>
    %30 = tpu.iota {dimensions = array<i32: 2>} : vector<2x8x64xi32>
    %31 = vector.shape_cast %29 : vector<2x8xi32> to vector<2x8x1xi32>
    %32 = vector.broadcast %31 : vector<2x8x1xi32> to vector<2x8x64xi32>
    %33 = arith.cmpi eq, %30, %32 : vector<2x8x64xi32>
    %34 = arith.extui %33 : vector<2x8x64xi1> to vector<2x8x64xi32>
    %35 = arith.sitofp %34 : vector<2x8x64xi32> to vector<2x8x64xf32>
    %36 = vector.shape_cast %35 : vector<2x8x64xf32> to vector<16x64xf32>
    %cst = arith.constant dense<0.000000e+00> : vector<16x32xf32>
    %37 = tpu.matmul %36, %1, %cst {dimension_numbers = #tpu.dot_dimension_numbers<[1], [0], [0], [1], [0, 0, 1, 1], [], []>} : vector<16x64xf32>, vector<64x32xf32>, vector<16x32xf32> -> vector<16x32xf32>
    %cst_12 = arith.constant dense<0.000000e+00> : vector<16x96xf32>
    %38 = tpu.matmul %37, %2, %cst_12 {dimension_numbers = #tpu.dot_dimension_numbers<[1], [0], [0], [1], [0, 0, 1, 1], [], []>} : vector<16x32xf32>, vector<32x96xf32>, vector<16x96xf32> -> vector<16x96xf32>
    %39 = vector.broadcast %10 : vector<1x96xf32> to vector<16x96xf32>
    %40 = arith.addf %38, %39 : vector<16x96xf32>
    %41 = vector.extract_strided_slice %40 {offsets = [0, 0], sizes = [16, 32], strides = [1, 1]} : vector<16x96xf32> to vector<16x32xf32>
    %42 = vector.extract_strided_slice %40 {offsets = [0, 32], sizes = [16, 32], strides = [1, 1]} : vector<16x96xf32> to vector<16x32xf32>
    %43 = vector.extract_strided_slice %40 {offsets = [0, 64], sizes = [16, 32], strides = [1, 1]} : vector<16x96xf32> to vector<16x32xf32>
    %c1_i32 = arith.constant 1 : i32
    %44 = vector.broadcast %c1_i32 : i32 to vector<2x8xi32>
    %45 = arith.cmpi eq, %0, %44 : vector<2x8xi32>
    %cst_13 = arith.constant -1.000000e+09 : f32
    %cst_14 = arith.constant 0.000000e+00 : f32
    %46 = vector.broadcast %cst_13 : f32 to vector<2x8xf32>
    %47 = vector.broadcast %cst_14 : f32 to vector<2x8xf32>
    %48 = arith.select %45, %46, %47 : vector<2x8xi1>, vector<2x8xf32>
    %49 = vector.extract_strided_slice %41 {offsets = [0, 0], sizes = [8, 32], strides = [1, 1]} : vector<16x32xf32> to vector<8x32xf32>
    %50 = vector.extract_strided_slice %42 {offsets = [0, 0], sizes = [8, 32], strides = [1, 1]} : vector<16x32xf32> to vector<8x32xf32>
    %cst_15 = arith.constant dense<0.000000e+00> : vector<8x8xf32>
    %51 = tpu.matmul %49, %50, %cst_15 {dimension_numbers = #tpu.dot_dimension_numbers<[1], [1], [0], [0], [0, 0, 1, 0], [], []>} : vector<8x32xf32>, vector<8x32xf32>, vector<8x8xf32> -> vector<8x8xf32>
    %52 = vector.extract_strided_slice %48 {offsets = [0, 0], sizes = [1, 8], strides = [1, 1]} : vector<2x8xf32> to vector<1x8xf32>
    %53 = vector.broadcast %52 : vector<1x8xf32> to vector<8x8xf32>
    %54 = arith.addf %51, %53 : vector<8x8xf32>
    %55 = vector.extract_strided_slice %41 {offsets = [8, 0], sizes = [8, 32], strides = [1, 1]} : vector<16x32xf32> to vector<8x32xf32>
    %56 = vector.extract_strided_slice %42 {offsets = [8, 0], sizes = [8, 32], strides = [1, 1]} : vector<16x32xf32> to vector<8x32xf32>
    %cst_16 = arith.constant dense<0.000000e+00> : vector<8x8xf32>
    %57 = tpu.matmul %55, %56, %cst_16 {dimension_numbers = #tpu.dot_dimension_numbers<[1], [1], [0], [0], [0, 0, 1, 0], [], []>} : vector<8x32xf32>, vector<8x32xf32>, vector<8x8xf32> -> vector<8x8xf32>
    %58 = vector.extract_strided_slice %48 {offsets = [1, 0], sizes = [1, 8], strides = [1, 1]} : vector<2x8xf32> to vector<1x8xf32>
    %59 = vector.broadcast %58 : vector<1x8xf32> to vector<8x8xf32>
    %60 = arith.addf %57, %59 : vector<8x8xf32>
    %61 = tpu.concatenate %54, %60 in 0 : vector<8x8xf32>, vector<8x8xf32> -> vector<16x8xf32>
    %cst_17 = arith.constant dense<0xFF800000> : vector<16xf32>
    %62 = vector.multi_reduction <maximumf>, %61, %cst_17 [1] : vector<16x8xf32> to vector<16xf32>
    %63 = vector.shape_cast %62 : vector<16xf32> to vector<16x1xf32>
    %64 = vector.broadcast %63 : vector<16x1xf32> to vector<16x8xf32>
    %65 = arith.subf %61, %64 : vector<16x8xf32>
    %66 = math.exp %65 : vector<16x8xf32>
    %cst_18 = arith.constant dense<0.000000e+00> : vector<16xf32>
    %67 = vector.multi_reduction <add>, %66, %cst_18 [1] : vector<16x8xf32> to vector<16xf32>
    %68 = vector.shape_cast %67 : vector<16xf32> to vector<16x1xf32>
    %69 = vector.broadcast %68 : vector<16x1xf32> to vector<16x8xf32>
    %70 = arith.divf %66, %69 : vector<16x8xf32>
    %71 = vector.extract_strided_slice %70 {offsets = [0, 0], sizes = [8, 8], strides = [1, 1]} : vector<16x8xf32> to vector<8x8xf32>
    %72 = vector.extract_strided_slice %43 {offsets = [0, 0], sizes = [8, 32], strides = [1, 1]} : vector<16x32xf32> to vector<8x32xf32>
    %cst_19 = arith.constant dense<0.000000e+00> : vector<8x32xf32>
    %73 = tpu.matmul %71, %72, %cst_19 {dimension_numbers = #tpu.dot_dimension_numbers<[1], [0], [0], [1], [0, 0, 1, 1], [], []>} : vector<8x8xf32>, vector<8x32xf32>, vector<8x32xf32> -> vector<8x32xf32>
    %74 = vector.extract_strided_slice %70 {offsets = [8, 0], sizes = [8, 8], strides = [1, 1]} : vector<16x8xf32> to vector<8x8xf32>
    %75 = vector.extract_strided_slice %43 {offsets = [8, 0], sizes = [8, 32], strides = [1, 1]} : vector<16x32xf32> to vector<8x32xf32>
    %cst_20 = arith.constant dense<0.000000e+00> : vector<8x32xf32>
    %76 = tpu.matmul %74, %75, %cst_20 {dimension_numbers = #tpu.dot_dimension_numbers<[1], [0], [0], [1], [0, 0, 1, 1], [], []>} : vector<8x8xf32>, vector<8x32xf32>, vector<8x32xf32> -> vector<8x32xf32>
    %77 = tpu.concatenate %73, %76 in 0 : vector<8x32xf32>, vector<8x32xf32> -> vector<16x32xf32>
    %cst_21 = arith.constant dense<0.000000e+00> : vector<16x32xf32>
    %78 = tpu.matmul %77, %3, %cst_21 {dimension_numbers = #tpu.dot_dimension_numbers<[1], [0], [0], [1], [0, 0, 1, 1], [], []>} : vector<16x32xf32>, vector<32x32xf32>, vector<16x32xf32> -> vector<16x32xf32>
    %79 = vector.broadcast %11 : vector<1x32xf32> to vector<16x32xf32>
    %80 = arith.addf %78, %79 : vector<16x32xf32>
    %81 = arith.addf %37, %80 : vector<16x32xf32>
    %cst_22 = arith.constant dense<0.000000e+00> : vector<16xf32>
    %82 = vector.multi_reduction <add>, %81, %cst_22 [1] : vector<16x32xf32> to vector<16xf32>
    %83 = vector.shape_cast %82 : vector<16xf32> to vector<16x1xf32>
    %cst_23 = arith.constant 3.200000e+01 : f32
    %84 = vector.broadcast %cst_23 : f32 to vector<16x1xf32>
    %85 = arith.divf %83, %84 : vector<16x1xf32>
    %86 = vector.broadcast %85 : vector<16x1xf32> to vector<16x32xf32>
    %87 = arith.subf %81, %86 : vector<16x32xf32>
    %88 = arith.mulf %87, %87 : vector<16x32xf32>
    %cst_24 = arith.constant dense<0.000000e+00> : vector<16xf32>
    %89 = vector.multi_reduction <add>, %88, %cst_24 [1] : vector<16x32xf32> to vector<16xf32>
    %90 = vector.shape_cast %89 : vector<16xf32> to vector<16x1xf32>
    %cst_25 = arith.constant 3.200000e+01 : f32
    %91 = vector.broadcast %cst_25 : f32 to vector<16x1xf32>
    %92 = arith.divf %90, %91 : vector<16x1xf32>
    %93 = vector.broadcast %85 : vector<16x1xf32> to vector<16x32xf32>
    %94 = arith.subf %81, %93 : vector<16x32xf32>
    %cst_26 = arith.constant 9.99999996E-13 : f32
    %95 = vector.broadcast %cst_26 : f32 to vector<16x1xf32>
    %96 = arith.addf %92, %95 : vector<16x1xf32>
    %97 = math.rsqrt %96 : vector<16x1xf32>
    %98 = vector.broadcast %97 : vector<16x1xf32> to vector<16x32xf32>
    %99 = arith.mulf %94, %98 : vector<16x32xf32>
    %100 = vector.broadcast %12 : vector<1x32xf32> to vector<16x32xf32>
    %101 = arith.mulf %99, %100 : vector<16x32xf32>
    %102 = vector.broadcast %13 : vector<1x32xf32> to vector<16x32xf32>
    %103 = arith.addf %101, %102 : vector<16x32xf32>
    %cst_27 = arith.constant dense<0.000000e+00> : vector<16x64xf32>
    %104 = tpu.matmul %103, %4, %cst_27 {dimension_numbers = #tpu.dot_dimension_numbers<[1], [0], [0], [1], [0, 0, 1, 1], [], []>} : vector<16x32xf32>, vector<32x64xf32>, vector<16x64xf32> -> vector<16x64xf32>
    %105 = vector.broadcast %14 : vector<1x64xf32> to vector<16x64xf32>
    %106 = arith.addf %104, %105 : vector<16x64xf32>
    %cst_28 = arith.constant 0.000000e+00 : f32
    %107 = vector.broadcast %cst_28 : f32 to vector<16x64xf32>
    %108 = arith.maximumf %106, %107 : vector<16x64xf32>
    %cst_29 = arith.constant dense<0.000000e+00> : vector<16x32xf32>
    %109 = tpu.matmul %108, %5, %cst_29 {dimension_numbers = #tpu.dot_dimension_numbers<[1], [0], [0], [1], [0, 0, 1, 1], [], []>} : vector<16x64xf32>, vector<64x32xf32>, vector<16x32xf32> -> vector<16x32xf32>
    %110 = vector.broadcast %15 : vector<1x32xf32> to vector<16x32xf32>
    %111 = arith.addf %109, %110 : vector<16x32xf32>
    %112 = arith.addf %103, %111 : vector<16x32xf32>
    %cst_30 = arith.constant dense<0.000000e+00> : vector<16xf32>
    %113 = vector.multi_reduction <add>, %112, %cst_30 [1] : vector<16x32xf32> to vector<16xf32>
    %114 = vector.shape_cast %113 : vector<16xf32> to vector<16x1xf32>
    %cst_31 = arith.constant 3.200000e+01 : f32
    %115 = vector.broadcast %cst_31 : f32 to vector<16x1xf32>
    %116 = arith.divf %114, %115 : vector<16x1xf32>
    %117 = vector.broadcast %116 : vector<16x1xf32> to vector<16x32xf32>
    %118 = arith.subf %112, %117 : vector<16x32xf32>
    %119 = arith.mulf %118, %118 : vector<16x32xf32>
    %cst_32 = arith.constant dense<0.000000e+00> : vector<16xf32>
    %120 = vector.multi_reduction <add>, %119, %cst_32 [1] : vector<16x32xf32> to vector<16xf32>
    %121 = vector.shape_cast %120 : vector<16xf32> to vector<16x1xf32>
    %cst_33 = arith.constant 3.200000e+01 : f32
    %122 = vector.broadcast %cst_33 : f32 to vector<16x1xf32>
    %123 = arith.divf %121, %122 : vector<16x1xf32>
    %124 = vector.broadcast %116 : vector<16x1xf32> to vector<16x32xf32>
    %125 = arith.subf %112, %124 : vector<16x32xf32>
    %cst_34 = arith.constant 9.99999996E-13 : f32
    %126 = vector.broadcast %cst_34 : f32 to vector<16x1xf32>
    %127 = arith.addf %123, %126 : vector<16x1xf32>
    %128 = math.rsqrt %127 : vector<16x1xf32>
    %129 = vector.broadcast %128 : vector<16x1xf32> to vector<16x32xf32>
    %130 = arith.mulf %125, %129 : vector<16x32xf32>
    %131 = vector.broadcast %16 : vector<1x32xf32> to vector<16x32xf32>
    %132 = arith.mulf %130, %131 : vector<16x32xf32>
    %133 = vector.broadcast %17 : vector<1x32xf32> to vector<16x32xf32>
    %134 = arith.addf %132, %133 : vector<16x32xf32>
    %135 = tpu.iota {dimensions = array<i32: 1>} : vector<2x8xi32>
    %c50265_i32_35 = arith.constant 50265 : i32
    %136 = vector.broadcast %c50265_i32_35 : i32 to vector<2x8xi32>
    %137 = arith.cmpi eq, %0, %136 : vector<2x8xi32>
    %c8_i32 = arith.constant 8 : i32
    %138 = vector.broadcast %c8_i32 : i32 to vector<2x8xi32>
    %139 = arith.select %137, %135, %138 : vector<2x8xi1>, vector<2x8xi32>
    %140 = arith.sitofp %139 : vector<2x8xi32> to vector<2x8xf32>
    %cst_36 = arith.constant dense<0x7F800000> : vector<2xf32>
    %141 = vector.multi_reduction <minimumf>, %140, %cst_36 [1] : vector<2x8xf32> to vector<2xf32>
    %142 = vector.shape_cast %141 : vector<2xf32> to vector<2x1xf32>
    %cst_37 = arith.constant 8.000000e+00 : f32
    %143 = vector.broadcast %cst_37 : f32 to vector<2x1xf32>
    %144 = arith.cmpf oge, %142, %143 : vector<2x1xf32>
    %cst_38 = arith.constant 0.000000e+00 : f32
    %145 = vector.broadcast %cst_38 : f32 to vector<2x1xf32>
    %146 = arith.select %144, %145, %142 : vector<2x1xi1>, vector<2x1xf32>
    %147 = arith.fptosi %146 : vector<2x1xf32> to vector<2x1xi32>
    %148 = tpu.iota {dimensions = array<i32: 0>} : vector<2x16xi32>
    %149 = tpu.iota {dimensions = array<i32: 1>} : vector<2x16xi32>
    %c8_i32_39 = arith.constant 8 : i32
    %150 = vector.broadcast %c8_i32_39 : i32 to vector<2x16xi32>
    %151 = arith.muli %148, %150 : vector<2x16xi32>
    %152 = vector.broadcast %147 : vector<2x1xi32> to vector<2x16xi32>
    %153 = arith.addi %151, %152 : vector<2x16xi32>
    %154 = arith.cmpi eq, %149, %153 : vector<2x16xi32>
    %155 = arith.extui %154 : vector<2x16xi1> to vector<2x16xi32>
    %156 = arith.sitofp %155 : vector<2x16xi32> to vector<2x16xf32>
    %cst_40 = arith.constant dense<0.000000e+00> : vector<2x32xf32>
    %157 = tpu.matmul %156, %134, %cst_40 {dimension_numbers = #tpu.dot_dimension_numbers<[1], [0], [0], [1], [0, 0, 1, 1], [], []>} : vector<2x16xf32>, vector<16x32xf32>, vector<2x32xf32> -> vector<2x32xf32>
    %158 = tpu.concatenate %157, %8 in 0 : vector<2x32xf32>, vector<6x32xf32> -> vector<8x32xf32>
    %cst_41 = arith.constant dense<0.000000e+00> : vector<8x38xf32>
    %159 = tpu.matmul %158, %6, %cst_41 {dimension_numbers = #tpu.dot_dimension_numbers<[1], [0], [0], [1], [0, 0, 1, 1], [], []>} : vector<8x32xf32>, vector<32x38xf32>, vector<8x38xf32> -> vector<8x38xf32>
    %160 = vector.broadcast %18 : vector<1x38xf32> to vector<8x38xf32>
    %161 = arith.addf %159, %160 : vector<8x38xf32>
    %162 = vector.extract_strided_slice %161 {offsets = [0, 32], sizes = [2, 6], strides = [1, 1]} : vector<8x38xf32> to vector<2x6xf32>
    %163 = vector.extract_strided_slice %161 {offsets = [0, 0], sizes = [8, 32], strides = [1, 1]} : vector<8x38xf32> to vector<8x32xf32>
    %cst_42 = arith.constant dense<0.000000e+00> : vector<8xf32>
    %164 = vector.multi_reduction <add>, %163, %cst_42 [1] : vector<8x32xf32> to vector<8xf32>
    %165 = vector.shape_cast %164 : vector<8xf32> to vector<8x1xf32>
    %cst_43 = arith.constant 3.200000e+01 : f32
    %166 = vector.broadcast %cst_43 : f32 to vector<8x1xf32>
    %167 = arith.divf %165, %166 : vector<8x1xf32>
    %168 = vector.broadcast %167 : vector<8x1xf32> to vector<8x32xf32>
    %169 = arith.subf %163, %168 : vector<8x32xf32>
    %170 = arith.mulf %169, %169 : vector<8x32xf32>
    %cst_44 = arith.constant dense<0.000000e+00> : vector<8xf32>
    %171 = vector.multi_reduction <add>, %170, %cst_44 [1] : vector<8x32xf32> to vector<8xf32>
    %172 = vector.shape_cast %171 : vector<8xf32> to vector<8x1xf32>
    %cst_45 = arith.constant 3.200000e+01 : f32
    %173 = vector.broadcast %cst_45 : f32 to vector<8x1xf32>
    %174 = arith.divf %172, %173 : vector<8x1xf32>
    %175 = vector.broadcast %167 : vector<8x1xf32> to vector<8x32xf32>
    %176 = arith.subf %163, %175 : vector<8x32xf32>
    %cst_46 = arith.constant 9.99999974E-6 : f32
    %177 = vector.broadcast %cst_46 : f32 to vector<8x1xf32>
    %178 = arith.addf %174, %177 : vector<8x1xf32>
    %179 = math.rsqrt %178 : vector<8x1xf32>
    %180 = vector.broadcast %179 : vector<8x1xf32> to vector<8x32xf32>
    %181 = arith.mulf %176, %180 : vector<8x32xf32>
    %182 = vector.broadcast %19 : vector<1x32xf32> to vector<8x32xf32>
    %183 = arith.mulf %181, %182 : vector<8x32xf32>
    %184 = vector.broadcast %20 : vector<1x32xf32> to vector<8x32xf32>
    %185 = arith.addf %183, %184 : vector<8x32xf32>
    %cst_47 = arith.constant 0.000000e+00 : f32
    %186 = vector.broadcast %cst_47 : f32 to vector<8x32xf32>
    %187 = arith.maximumf %185, %186 : vector<8x32xf32>
    %cst_48 = arith.constant dense<0.000000e+00> : vector<8x16xf32>
    %188 = tpu.matmul %187, %7, %cst_48 {dimension_numbers = #tpu.dot_dimension_numbers<[1], [0], [0], [1], [0, 0, 1, 1], [], []>} : vector<8x32xf32>, vector<32x16xf32>, vector<8x16xf32> -> vector<8x16xf32>
    %189 = vector.broadcast %21 : vector<1x16xf32> to vector<8x16xf32>
    %190 = arith.addf %188, %189 : vector<8x16xf32>
    %191 = vector.extract_strided_slice %190 {offsets = [0, 0], sizes = [2, 16], strides = [1, 1]} : vector<8x16xf32> to vector<2x16xf32>
    %192 = vector.extract_strided_slice %190 {offsets = [2, 0], sizes = [6, 16], strides = [1, 1]} : vector<8x16xf32> to vector<6x16xf32>
    %193 = arith.mulf %191, %191 : vector<2x16xf32>
    %cst_49 = arith.constant dense<0.000000e+00> : vector<2xf32>
    %194 = vector.multi_reduction <add>, %193, %cst_49 [1] : vector<2x16xf32> to vector<2xf32>
    %195 = vector.shape_cast %194 : vector<2xf32> to vector<2x1xf32>
    %cst_50 = arith.constant 1.000000e-16 : f32
    %196 = vector.broadcast %cst_50 : f32 to vector<2x1xf32>
    %197 = arith.maximumf %195, %196 : vector<2x1xf32>
    %198 = math.rsqrt %197 : vector<2x1xf32>
    %199 = arith.mulf %192, %192 : vector<6x16xf32>
    %cst_51 = arith.constant dense<0.000000e+00> : vector<6xf32>
    %200 = vector.multi_reduction <add>, %199, %cst_51 [1] : vector<6x16xf32> to vector<6xf32>
    %201 = vector.shape_cast %200 : vector<6xf32> to vector<6x1xf32>
    %cst_52 = arith.constant 1.000000e-16 : f32
    %202 = vector.broadcast %cst_52 : f32 to vector<6x1xf32>
    %203 = arith.maximumf %201, %202 : vector<6x1xf32>
    %204 = math.rsqrt %203 : vector<6x1xf32>
    %205 = vector.broadcast %198 : vector<2x1xf32> to vector<2x16xf32>
    %206 = arith.mulf %191, %205 : vector<2x16xf32>
    %207 = vector.broadcast %204 : vector<6x1xf32> to vector<6x16xf32>
    %208 = arith.mulf %192, %207 : vector<6x16xf32>
    %cst_53 = arith.constant dense<0.000000e+00> : vector<2x6xf32>
    %209 = tpu.matmul %206, %208, %cst_53 {dimension_numbers = #tpu.dot_dimension_numbers<[1], [1], [0], [0], [0, 0, 1, 0], [], []>} : vector<2x16xf32>, vector<6x16xf32>, vector<2x6xf32> -> vector<2x6xf32>
    %cst_54 = arith.constant 1.000000e+00 : f32
    %210 = vector.broadcast %cst_54 : f32 to vector<2x6xf32>
    %211 = arith.addf %210, %209 : vector<2x6xf32>
    %cst_55 = arith.constant 5.000000e-01 : f32
    %212 = vector.broadcast %cst_55 : f32 to vector<2x6xf32>
    %213 = arith.mulf %211, %212 : vector<2x6xf32>
    %cst_56 = arith.constant 9.99999993E-9 : f32
    %214 = vector.broadcast %cst_56 : f32 to vector<2x6xf32>
    %215 = arith.addf %213, %214 : vector<2x6xf32>
    %cst_57 = arith.constant 0.000000e+00 : f32
    %216 = vector.broadcast %cst_57 : f32 to vector<2x2xf32>
    %cst_58 = arith.constant 0.000000e+00 : f32
    %217 = vector.broadcast %cst_58 : f32 to vector<2x66xf32>
    %218 = tpu.concatenate %157, %191, %162, %216, %215, %217 in 1 : vector<2x32xf32>, vector<2x16xf32>, vector<2x6xf32>, vector<2x2xf32>, vector<2x6xf32>, vector<2x66xf32> -> vector<2x128xf32>
    %c0_59 = arith.constant 0 : index
    %c0_60 = arith.constant 0 : index
    %219 = vector.load %arg3[%c0_59, %c0_60] : memref<2x128xf32, #tpu.memory_space<vmem>>, vector<2x128xf32>
    tpu.vector_store %arg3[%c0_59, %c0_60], %218 {strides = array<i32>} : memref<2x128xf32, #tpu.memory_space<vmem>>, vector<2x128xf32>,
    return
  }
  func.func @transform_0(%arg0: i32) -> (i32, i32) {
    %c0_i32 = arith.constant 0 : i32
    %c0_i32_0 = arith.constant 0 : i32
    %c0_i32_1 = arith.constant 0 : i32
    return %c0_i32, %c0_i32_0 : i32, i32
  }
  func.func @transform_1(%arg0: i32) -> (i32, i32) {
    %c0_i32 = arith.constant 0 : i32
    %c0_i32_0 = arith.constant 0 : i32
    %c0_i32_1 = arith.constant 0 : i32
    return %c0_i32, %c0_i32_0 : i32, i32
  }
  func.func @transform_2(%arg0: i32) -> (i32, i32) {
    %c0_i32 = arith.constant 0 : i32
    %c0_i32_0 = arith.constant 0 : i32
    %c0_i32_1 = arith.constant 0 : i32
    return %c0_i32, %c0_i32_0 : i32, i32
  }
}

</mosaic_0001>

<llo_original>
// kernel: clmodel_forward.1
$region0: #{clmodel_forward.1}
  #allocation0 [shape = 'u32[]', space=smem, size = 0x4, offset = 0x4, fixed_abs, tag = 'smem constant byte address 0x4 - core index']
  #allocation1 [shape = 'u32[144,128]{1,0:T(1,128)}', space=vmem, size = 0x12000, scoped, tag = 'internal scratch']
  %s0 = inlined_call_operand.hbm [shape: s32[2,8], index: 0, kind: input, shape index: {}]
  %s1 = inlined_call_operand.hbm [shape: f32[312,128], index: 1, kind: input, shape index: {}]
  %s2 = inlined_call_operand.vmem [shape: f32[2,128], index: 2, kind: output, shape index: {}]
  %s3 = sld [smem:[#allocation0]]
  $region26: #{clmodel_forward.1} parent=0
    _
  %s5 = ssub.s32 1, %s3
  %s6 = scalar_select 0, %s5, %s3
  $region1: #{clmodel_forward.1} parent=0
    #allocation2 [shape = 'u8[1024]{0}', space=vmem, size = 0x400, scoped, tag = 'input window, operand 0, single buffered']
    #allocation3 [shape = 's32[1]{0}', space=sflag, size = 0x4, scoped, tag = 'scoped memory for clmodel_forward.1']
    #allocation4 [shape = 'u8[159744]{0}', space=vmem, size = 0x27000, scoped, tag = 'input window, operand 1, single buffered']
    #allocation5 [shape = 's32[1]{0}', space=sflag, size = 0x4, scoped, tag = 'scoped memory for clmodel_forward.1']
    %7 = vsyncpa [#allocation3], 0
    %8 = vsyncpa [#allocation5], 0
    // Predicated region
    $region2: #{clmodel_forward.1} parent=1 // pred_check
      _
    $region3: #{clmodel_forward.1} parent=1 // pred_check_branch
      %10 = sbr.rel (0) target = $region5
    $region4: #{clmodel_forward.1} parent=1 // pred_region
      %s12 = ssub.s32 32, 32
      %13 = vsyncadd [#allocation3], %s12
      %s15 = sshll.u32 [#allocation2], 4
      %s16 = int_to_ptr.vmem [resolvable:$true] %s15
      %18 = dma.hbm_to_vmem [thread:$0]  %s0, 32, %s16, [#allocation3]
    $region5: #{clmodel_forward.1} parent=1 // pred_fallthru
      _
    // Predicated region
    $region6: #{clmodel_forward.1} parent=1 // pred_check
      _
    $region7: #{clmodel_forward.1} parent=1 // pred_check_branch
      %20 = sbr.rel (0) target = $region9
    $region8: #{clmodel_forward.1} parent=1 // pred_region
      %s22 = ssub.s32 4992, 4992
      %23 = vsyncadd [#allocation5], %s22
      %s24 = sshll.u32 [#allocation4], 4
      %s25 = int_to_ptr.vmem [resolvable:$true] %s24
      %30 = dma.hbm_to_vmem [thread:$0]  %s1, 4992, %s25, [#allocation5], 128, 128, 8
    $region9: #{clmodel_forward.1} parent=1 // pred_fallthru
      _
    // Predicated region
    $region10: #{clmodel_forward.1} parent=1 // pred_check
      _
    $region11: #{clmodel_forward.1} parent=1 // pred_check_branch
      %32 = sbr.rel (0) target = $region13
    $region12: #{clmodel_forward.1} parent=1 // pred_region
      %33 = dma.done [#allocation3], 32
    $region13: #{clmodel_forward.1} parent=1 // pred_fallthru
      _
    // Predicated region
    $region14: #{clmodel_forward.1} parent=1 // pred_check
      _
    $region15: #{clmodel_forward.1} parent=1 // pred_check_branch
      %35 = sbr.rel (0) target = $region17
    $region16: #{clmodel_forward.1} parent=1 // pred_region
      %36 = dma.done [#allocation5], 4992
    $region17: #{clmodel_forward.1} parent=1 // pred_fallthru
      _
    %v37 = vld [vmem:[#allocation2] sm:$0x3]
    %v38 = vld [vmem:[#allocation4] sm:$0xff]
    %v39 = vld [vmem:[#allocation4 + $0x8] sm:$0xff]
    %v40 = vld [vmem:[#allocation4 + $0x10] sm:$0xff]
    %v41 = vld [vmem:[#allocation4 + $0x18] sm:$0xff]
    %v42 = vld [vmem:[#allocation4 + $0x20] sm:$0xff]
    %v43 = vld [vmem:[#allocation4 + $0x28] sm:$0xff]
    %v44 = vld [vmem:[#allocation4 + $0x30] sm:$0xff]
    %v45 = vld [vmem:[#allocation4 + $0x38] sm:$0xff]
    %v46 = vld [vmem:[#allocation4 + $0x40] sm:$0xff]
    %v47 = vld [vmem:[#allocation4 + $0x48] sm:$0xff]
    %v48 = vld [vmem:[#allocation4 + $0x50] sm:$0xff]
    %v49 = vld [vmem:[#allocation4 + $0x58] sm:$0xff]
    %v50 = vld [vmem:[#allocation4 + $0x60] sm:$0xff]
    %v51 = vld [vmem:[#allocation4 + $0x68] sm:$0xff]
    %v52 = vld [vmem:[#allocation4 + $0x70] sm:$0xff]
    %v53 = vld [vmem:[#allocation4 + $0x78] sm:$0xff]
    %v54 = vld [vmem:[#allocation4 + $0x80] sm:$0xff]
    %v55 = vld [vmem:[#allocation4 + $0x88] sm:$0xff]
    %v56 = vld [vmem:[#allocation4 + $0x90] sm:$0xff]
    %v57 = vld [vmem:[#allocation4 + $0x98] sm:$0xff]
    %v58 = vld [vmem:[#allocation4 + $0xa0] sm:$0xff]
    %v59 = vld [vmem:[#allocation4 + $0xa8] sm:$0xff]
    %v60 = vld [vmem:[#allocation4 + $0xb0] sm:$0xff]
    %v61 = vld [vmem:[#allocation4 + $0xb8] sm:$0xff]
    %v62 = vld [vmem:[#allocation4 + $0xc0] sm:$0xff]
    %v63 = vld [vmem:[#allocation4 + $0xc8] sm:$0xff]
    %v64 = vld [vmem:[#allocation4 + $0xd0] sm:$0xff]
    %v65 = vld [vmem:[#allocation4 + $0xd8] sm:$0xff]
    %v66 = vld [vmem:[#allocation4 + $0xe0] sm:$0xff]
    %v67 = vld [vmem:[#allocation4 + $0xe8] sm:$0xff]
    %v68 = vld [vmem:[#allocation4 + $0xf0] sm:$0xff]
    %v69 = vld [vmem:[#allocation4 + $0xf8] sm:$0xff]
    %v70 = vld [vmem:[#allocation4 + $0x100] sm:$0xff]
    %v71 = vld [vmem:[#allocation4 + $0x108] sm:$0xff]
    %v72 = vld [vmem:[#allocation4 + $0x110] sm:$0xff]
    %v73 = vld [vmem:[#allocation4 + $0x118] sm:$0xff]
    %v74 = vld [vmem:[#allocation4 + $0x120] sm:$0x3f]
    %v75 = vld [vmem:[#allocation4 + $0x128] sm:$0xff]
    %v76 = vld [vmem:[#allocation4 + $0x130] sm:$0xf]
    %vm77 = vcmp.eq.s32.totalorder %v37, 50265
    %v78 = vsel %vm77, 63, %v37
    %vm79 = vcmp.gt.s32.totalorder %v78, 0
    %v80 = vsel %vm79, %v78, 0
    %vm81 = vcmp.lt.s32.totalorder %v80, 63
    %v82 = vsel %vm81, %v80, 63
    %v83 = vlaneseq
    %v84 = vand.u32 %v83, 127
    %v85 = vlaneseq
    %v86 = vshrl.u32 %v85, 7
    %v87 = vsub.s32 0, %v86
    %v88 = vrot.slane %v82, %v87
    %90 = vbcast.lane.b32.xlu0 %v88, 256
    %v91 = vpop.permute.xlu0 %90
    %v92 = vlaneseq
    %v93 = vshrl.u32 %v92, 7
    %v94 = vsub.s32 1, %v93
    %v95 = vrot.slane %v82, %v94
    %97 = vbcast.lane.b32.xlu0 %v95, 256
    %v98 = vpop.permute.xlu0 %97
    %vm99 = vcmp.eq.s32.totalorder %v84, %v91
    %vm100 = vcmp.eq.s32.totalorder %v84, %v98
    %v101 = vsel %vm99, 1, 0
    %v102 = vsel %vm100, 1, 0
    %v103 = vcvt.s32.f32 %v101
    %v104 = vcvt.s32.f32 %v102
    %vm105 = vcmask 523264
    %v107 = vsel %vm105, %v103, 0
    %v110 = vsel %vm105, %v104, 0
    %112 = vmatprep.subr.mxu0 0.0
    %113 = vmatpush1.msra.mxu0 0.0
    %114 = vmatprep.subr.mxu0 0.0
    %115 = vmatpush1.msra.mxu0 0.0
    %116 = vmatprep.subr.mxu0 0.0
    %117 = vmatpush1.msra.mxu0 0.0
    %118 = vmatprep.subr.mxu0 0.0
    %119 = vmatpush1.msra.mxu0 0.0
    %120 = vmatprep.subr.mxu0 0.0
    %121 = vmatpush1.msra.mxu0 0.0
    %122 = vmatprep.subr.mxu0 0.0
    %123 = vmatpush1.msra.mxu0 0.0
    %124 = vmatprep.subr.mxu0 0.0
    %125 = vmatpush1.msra.mxu0 0.0
    %126 = vmatprep.subr.mxu0 0.0
    %127 = vmatpush1.msra.mxu0 0.0
    %128 = vmatprep.subr.mxu0 0.0
    %129 = vmatpush1.msra.mxu0 %v45
    %130 = vmatprep.subr.mxu0 0.0
    %131 = vmatpush1.msra.mxu0 %v44
    %132 = vmatprep.subr.mxu0 0.0
    %133 = vmatpush1.msra.mxu0 %v43
    %134 = vmatprep.subr.mxu0 0.0
    %135 = vmatpush1.msra.mxu0 %v42
    %136 = vmatprep.subr.mxu0 0.0
    %137 = vmatpush1.msra.mxu0 %v41
    %138 = vmatprep.subr.mxu0 0.0
    %139 = vmatpush1.msra.mxu0 %v40
    %140 = vmatprep.subr.mxu0 0.0
    %141 = vmatpush1.msra.mxu0 %v39
    %142 = vmatprep.subr.mxu0 0.0
    %143 = vmatpush1.msra.mxu0 %v38
    %144 = vmatprep.subr.mxu0 0.0
    %145 = vmatpush2.msra.mxu0 0.0
    %146 = vmatprep.subr.mxu0 0.0
    %147 = vmatpush2.msra.mxu0 0.0
    %148 = vmatprep.subr.mxu0 0.0
    %149 = vmatpush2.msra.mxu0 0.0
    %150 = vmatprep.subr.mxu0 0.0
    %151 = vmatpush2.msra.mxu0 0.0
    %152 = vmatprep.subr.mxu0 0.0
    %153 = vmatpush2.msra.mxu0 0.0
    %154 = vmatprep.subr.mxu0 0.0
    %155 = vmatpush2.msra.mxu0 0.0
    %156 = vmatprep.subr.mxu0 0.0
    %157 = vmatpush2.msra.mxu0 0.0
    %158 = vmatprep.subr.mxu0 0.0
    %159 = vmatpush2.msra.mxu0 0.0
    %160 = vmatprep.subr.mxu0 0.0
    %161 = vmatpush2.msra.mxu0 0.0
    %162 = vmatprep.subr.mxu0 0.0
    %163 = vmatpush2.msra.mxu0 0.0
    %164 = vmatprep.subr.mxu0 0.0
    %165 = vmatpush2.msra.mxu0 0.0
    %166 = vmatprep.subr.mxu0 0.0
    %167 = vmatpush2.msra.mxu0 0.0
    %168 = vmatprep.subr.mxu0 0.0
    %169 = vmatpush2.msra.mxu0 0.0
    %170 = vmatprep.subr.mxu0 0.0
    %171 = vmatpush2.msra.mxu0 0.0
    %172 = vmatprep.subr.mxu0 0.0
    %173 = vmatpush2.msra.mxu0 0.0
    %174 = vmatprep.subr.mxu0 0.0
    %175 = vmatpush2.msra.mxu0 0.0
    %176 = vmatprep.mubr.f32.mxu0 0.0
    %177 = vmatmul.mubr.f32.gmra.mxu0 %v107
    %v178 = vpop.f32.mrf.mxu0
    %v179 = vadd.f32 0.0, %v178
    %v180 = vpop.f32.mrf.mxu0
    %181 = vmatprep.mubr.f32.mxu0 0.0
    %182 = vmatmul.mubr.f32.gmra.mxu0 %v110
    %v183 = vpop.f32.mrf.mxu0
    %v184 = vadd.f32 0.0, %v183
    %v185 = vpop.f32.mrf.mxu0
    %186 = vdwg.mxu0
    %v187 = vlaneseq
    %v188 = vshrl.u32 %v187, 7
    %v189 = vsub.s32 0, %v188
    %v190 = vrot.slane %v75, %v189
    %vm191 = vcmask 261120
    %v193 = vsel %vm191, %v179, 0
    %v196 = vsel %vm191, %v184, 0
    %198 = vmatprep.subr.mxu0 0.0
    %199 = vmatpush1.msra.mxu0 0.0
    %200 = vmatprep.subr.mxu0 0.0
    %201 = vmatpush1.msra.mxu0 0.0
    %202 = vmatprep.subr.mxu0 0.0
    %203 = vmatpush1.msra.mxu0 0.0
    %204 = vmatprep.subr.mxu0 0.0
    %205 = vmatpush1.msra.mxu0 0.0
    %206 = vmatprep.subr.mxu0 0.0
    %207 = vmatpush1.msra.mxu0 0.0
    %208 = vmatprep.subr.mxu0 0.0
    %209 = vmatpush1.msra.mxu0 0.0
    %210 = vmatprep.subr.mxu0 0.0
    %211 = vmatpush1.msra.mxu0 0.0
    %212 = vmatprep.subr.mxu0 0.0
    %213 = vmatpush1.msra.mxu0 0.0
    %214 = vmatprep.subr.mxu0 0.0
    %215 = vmatpush1.msra.mxu0 0.0
    %216 = vmatprep.subr.mxu0 0.0
    %217 = vmatpush1.msra.mxu0 0.0
    %218 = vmatprep.subr.mxu0 0.0
    %219 = vmatpush1.msra.mxu0 0.0
    %220 = vmatprep.subr.mxu0 0.0
    %221 = vmatpush1.msra.mxu0 0.0
    %222 = vmatprep.subr.mxu0 0.0
    %223 = vmatpush1.msra.mxu0 %v49
    %224 = vmatprep.subr.mxu0 0.0
    %225 = vmatpush1.msra.mxu0 %v48
    %226 = vmatprep.subr.mxu0 0.0
    %227 = vmatpush1.msra.mxu0 %v47
    %228 = vmatprep.subr.mxu0 0.0
    %229 = vmatpush1.msra.mxu0 %v46
    %230 = vmatprep.subr.mxu0 0.0
    %231 = vmatpush2.msra.mxu0 0.0
    %232 = vmatprep.subr.mxu0 0.0
    %233 = vmatpush2.msra.mxu0 0.0
    %234 = vmatprep.subr.mxu0 0.0
    %235 = vmatpush2.msra.mxu0 0.0
    %236 = vmatprep.subr.mxu0 0.0
    %237 = vmatpush2.msra.mxu0 0.0
    %238 = vmatprep.subr.mxu0 0.0
    %239 = vmatpush2.msra.mxu0 0.0
    %240 = vmatprep.subr.mxu0 0.0
    %241 = vmatpush2.msra.mxu0 0.0
    %242 = vmatprep.subr.mxu0 0.0
    %243 = vmatpush2.msra.mxu0 0.0
    %244 = vmatprep.subr.mxu0 0.0
    %245 = vmatpush2.msra.mxu0 0.0
    %246 = vmatprep.subr.mxu0 0.0
    %247 = vmatpush2.msra.mxu0 0.0
    %248 = vmatprep.subr.mxu0 0.0
    %249 = vmatpush2.msra.mxu0 0.0
    %250 = vmatprep.subr.mxu0 0.0
    %251 = vmatpush2.msra.mxu0 0.0
    %252 = vmatprep.subr.mxu0 0.0
    %253 = vmatpush2.msra.mxu0 0.0
    %254 = vmatprep.subr.mxu0 0.0
    %255 = vmatpush2.msra.mxu0 0.0
    %256 = vmatprep.subr.mxu0 0.0
    %257 = vmatpush2.msra.mxu0 0.0
    %258 = vmatprep.subr.mxu0 0.0
    %259 = vmatpush2.msra.mxu0 0.0
    %260 = vmatprep.subr.mxu0 0.0
    %261 = vmatpush2.msra.mxu0 0.0
    %262 = vmatprep.mubr.f32.mxu0 0.0
    %263 = vmatmul.mubr.f32.gmra.mxu0 %v193
    %v264 = vpop.f32.mrf.mxu0
    %v265 = vadd.f32 %v190, %v264
    %v266 = vpop.f32.mrf.mxu0
    %267 = vmatprep.mubr.f32.mxu0 0.0
    %268 = vmatmul.mubr.f32.gmra.mxu0 %v196
    %v269 = vpop.f32.mrf.mxu0
    %v270 = vadd.f32 %v190, %v269
    %v271 = vpop.f32.mrf.mxu0
    %272 = vdwg.mxu0
    %vm273 = vcmp.eq.s32.totalorder %v37, 1
    %v274 = vsel %vm273, -1e+09, 0.0
    %v275 = vlaneseq
    %v276 = vshrl.u32 %v275, 7
    %v277 = vsub.s32 0, %v276
    %v278 = vrot.slane %v274, %v277
    %280 = vrot.lane.b32.xlu0 %v265, 96
    %v281 = vpop.permute.xlu0 %280
    %v282 = vsel %vm191, %v265, 0
    %v284 = vsel %vm191, %v281, 0
    %286 = vmatprep.subr.mxu0 0.0
    %287 = vmatpush1.xpose.msra.mxu0 0.0
    %288 = vmatprep.subr.mxu0 0.0
    %289 = vmatpush1.xpose.msra.mxu0 0.0
    %290 = vmatprep.subr.mxu0 0.0
    %291 = vmatpush1.xpose.msra.mxu0 0.0
    %292 = vmatprep.subr.mxu0 0.0
    %293 = vmatpush1.xpose.msra.mxu0 0.0
    %294 = vmatprep.subr.mxu0 0.0
    %295 = vmatpush1.xpose.msra.mxu0 0.0
    %296 = vmatprep.subr.mxu0 0.0
    %297 = vmatpush1.xpose.msra.mxu0 0.0
    %298 = vmatprep.subr.mxu0 0.0
    %299 = vmatpush1.xpose.msra.mxu0 0.0
    %300 = vmatprep.subr.mxu0 0.0
    %301 = vmatpush1.xpose.msra.mxu0 0.0
    %302 = vmatprep.subr.mxu0 0.0
    %303 = vmatpush1.xpose.msra.mxu0 0.0
    %304 = vmatprep.subr.mxu0 0.0
    %305 = vmatpush1.xpose.msra.mxu0 0.0
    %306 = vmatprep.subr.mxu0 0.0
    %307 = vmatpush1.xpose.msra.mxu0 0.0
    %308 = vmatprep.subr.mxu0 0.0
    %309 = vmatpush1.xpose.msra.mxu0 0.0
    %310 = vmatprep.subr.mxu0 0.0
    %311 = vmatpush1.xpose.msra.mxu0 0.0
    %312 = vmatprep.subr.mxu0 0.0
    %313 = vmatpush1.xpose.msra.mxu0 0.0
    %314 = vmatprep.subr.mxu0 0.0
    %315 = vmatpush1.xpose.msra.mxu0 0.0
    %316 = vmatprep.subr.mxu0 0.0
    %317 = vmatpush1.xpose.msra.mxu0 %v284
    %318 = vmatprep.subr.mxu0 0.0
    %319 = vmatpush2.xpose.msra.mxu0 0.0
    %320 = vmatprep.subr.mxu0 0.0
    %321 = vmatpush2.xpose.msra.mxu0 0.0
    %322 = vmatprep.subr.mxu0 0.0
    %323 = vmatpush2.xpose.msra.mxu0 0.0
    %324 = vmatprep.subr.mxu0 0.0
    %325 = vmatpush2.xpose.msra.mxu0 0.0
    %326 = vmatprep.subr.mxu0 0.0
    %327 = vmatpush2.xpose.msra.mxu0 0.0
    %328 = vmatprep.subr.mxu0 0.0
    %329 = vmatpush2.xpose.msra.mxu0 0.0
    %330 = vmatprep.subr.mxu0 0.0
    %331 = vmatpush2.xpose.msra.mxu0 0.0
    %332 = vmatprep.subr.mxu0 0.0
    %333 = vmatpush2.xpose.msra.mxu0 0.0
    %334 = vmatprep.subr.mxu0 0.0
    %335 = vmatpush2.xpose.msra.mxu0 0.0
    %336 = vmatprep.subr.mxu0 0.0
    %337 = vmatpush2.xpose.msra.mxu0 0.0
    %338 = vmatprep.subr.mxu0 0.0
    %339 = vmatpush2.xpose.msra.mxu0 0.0
    %340 = vmatprep.subr.mxu0 0.0
    %341 = vmatpush2.xpose.msra.mxu0 0.0
    %342 = vmatprep.subr.mxu0 0.0
    %343 = vmatpush2.xpose.msra.mxu0 0.0
    %344 = vmatprep.subr.mxu0 0.0
    %345 = vmatpush2.xpose.msra.mxu0 0.0
    %346 = vmatprep.subr.mxu0 0.0
    %347 = vmatpush2.xpose.msra.mxu0 0.0
    %348 = vmatprep.subr.mxu0 0.0
    %349 = vmatpush2.xpose.msra.mxu0 0.0
    %350 = vmatprep.mubr.f32.mxu0 0.0
    %351 = vmatmul.mubr.f32.gmra.mxu0 %v282
    %v352 = vpop.f32.mrf.mxu0
    %v353 = vadd.f32 %v278, %v352
    %v354 = vpop.f32.mrf.mxu0
    %355 = vdwg.mxu0
    %v356 = vlaneseq
    %v357 = vshrl.u32 %v356, 7
    %v358 = vsub.s32 1, %v357
    %v359 = vrot.slane %v274, %v358
    %361 = vrot.lane.b32.xlu0 %v270, 96
    %v362 = vpop.permute.xlu0 %361
    %v363 = vsel %vm191, %v270, 0
    %v365 = vsel %vm191, %v362, 0
    %367 = vmatprep.subr.mxu0 0.0
    %368 = vmatpush1.xpose.msra.mxu0 0.0
    %369 = vmatprep.subr.mxu0 0.0
    %370 = vmatpush1.xpose.msra.mxu0 0.0
    %371 = vmatprep.subr.mxu0 0.0
    %372 = vmatpush1.xpose.msra.mxu0 0.0
    %373 = vmatprep.subr.mxu0 0.0
    %374 = vmatpush1.xpose.msra.mxu0 0.0
    %375 = vmatprep.subr.mxu0 0.0
    %376 = vmatpush1.xpose.msra.mxu0 0.0
    %377 = vmatprep.subr.mxu0 0.0
    %378 = vmatpush1.xpose.msra.mxu0 0.0
    %379 = vmatprep.subr.mxu0 0.0
    %380 = vmatpush1.xpose.msra.mxu0 0.0
    %381 = vmatprep.subr.mxu0 0.0
    %382 = vmatpush1.xpose.msra.mxu0 0.0
    %383 = vmatprep.subr.mxu0 0.0
    %384 = vmatpush1.xpose.msra.mxu0 0.0
    %385 = vmatprep.subr.mxu0 0.0
    %386 = vmatpush1.xpose.msra.mxu0 0.0
    %387 = vmatprep.subr.mxu0 0.0
    %388 = vmatpush1.xpose.msra.mxu0 0.0
    %389 = vmatprep.subr.mxu0 0.0
    %390 = vmatpush1.xpose.msra.mxu0 0.0
    %391 = vmatprep.subr.mxu0 0.0
    %392 = vmatpush1.xpose.msra.mxu0 0.0
    %393 = vmatprep.subr.mxu0 0.0
    %394 = vmatpush1.xpose.msra.mxu0 0.0
    %395 = vmatprep.subr.mxu0 0.0
    %396 = vmatpush1.xpose.msra.mxu0 0.0
    %397 = vmatprep.subr.mxu0 0.0
    %398 = vmatpush1.xpose.msra.mxu0 %v365
    %399 = vmatprep.subr.mxu0 0.0
    %400 = vmatpush2.xpose.msra.mxu0 0.0
    %401 = vmatprep.subr.mxu0 0.0
    %402 = vmatpush2.xpose.msra.mxu0 0.0
    %403 = vmatprep.subr.mxu0 0.0
    %404 = vmatpush2.xpose.msra.mxu0 0.0
    %405 = vmatprep.subr.mxu0 0.0
    %406 = vmatpush2.xpose.msra.mxu0 0.0
    %407 = vmatprep.subr.mxu0 0.0
    %408 = vmatpush2.xpose.msra.mxu0 0.0
    %409 = vmatprep.subr.mxu0 0.0
    %410 = vmatpush2.xpose.msra.mxu0 0.0
    %411 = vmatprep.subr.mxu0 0.0
    %412 = vmatpush2.xpose.msra.mxu0 0.0
    %413 = vmatprep.subr.mxu0 0.0
    %414 = vmatpush2.xpose.msra.mxu0 0.0
    %415 = vmatprep.subr.mxu0 0.0
    %416 = vmatpush2.xpose.msra.mxu0 0.0
    %417 = vmatprep.subr.mxu0 0.0
    %418 = vmatpush2.xpose.msra.mxu0 0.0
    %419 = vmatprep.subr.mxu0 0.0
    %420 = vmatpush2.xpose.msra.mxu0 0.0
    %421 = vmatprep.subr.mxu0 0.0
    %422 = vmatpush2.xpose.msra.mxu0 0.0
    %423 = vmatprep.subr.mxu0 0.0
    %424 = vmatpush2.xpose.msra.mxu0 0.0
    %425 = vmatprep.subr.mxu0 0.0
    %426 = vmatpush2.xpose.msra.mxu0 0.0
    %427 = vmatprep.subr.mxu0 0.0
    %428 = vmatpush2.xpose.msra.mxu0 0.0
    %429 = vmatprep.subr.mxu0 0.0
    %430 = vmatpush2.xpose.msra.mxu0 0.0
    %431 = vmatprep.mubr.f32.mxu0 0.0
    %432 = vmatmul.mubr.f32.gmra.mxu0 %v363
    %v433 = vpop.f32.mrf.mxu0
    %v434 = vadd.f32 %v359, %v433
    %v435 = vpop.f32.mrf.mxu0
    %436 = vdwg.mxu0
    %vm437 = vcmask 64512
    %v438 = vsel %vm437, %v353, -inf
    %439 = vmax.xlane.f32.xlu0 %v438
    %v440 = vpop.xlane.xlu0 %439
    %v441 = vsel %vm437, %v434, -inf
    %442 = vmax.xlane.f32.xlu0 %v441
    %v443 = vpop.xlane.xlu0 %442
    %v444 = vsub.f32 %v353, %v440
    %v445 = vsub.f32 %v434, %v443
    %v446 = vmul.f32 %v444, 1.442695
    %v447 = vpow.pop %v446
    %v448 = vmul.f32 %v445, 1.442695
    %v449 = vpow.pop %v448
    %v450 = vsel %vm437, %v447, 0.0
    %451 = vadd.xlane.f32.xlu0 %v450
    %v452 = vpop.xlane.xlu0 %451
    %v453 = vsel %vm437, %v449, 0.0
    %454 = vadd.xlane.f32.xlu0 %v453
    %v455 = vpop.xlane.xlu0 %454
    %v456 = vrcp.pop %v452
    %v457 = vmul.f32 %v447, %v456
    %v458 = vrcp.pop %v455
    %v459 = vmul.f32 %v449, %v458
    %460 = vrot.lane.b32.xlu0 %v265, 64
    %v461 = vpop.permute.xlu0 %460
    %v464 = vsel %vm437, %v457, 0
    %466 = vmatprep.subr.mxu0 0.0
    %467 = vmatpush1.msra.mxu0 0.0
    %468 = vmatprep.subr.mxu0 0.0
    %469 = vmatpush1.msra.mxu0 0.0
    %470 = vmatprep.subr.mxu0 0.0
    %471 = vmatpush1.msra.mxu0 0.0
    %472 = vmatprep.subr.mxu0 0.0
    %473 = vmatpush1.msra.mxu0 0.0
    %474 = vmatprep.subr.mxu0 0.0
    %475 = vmatpush1.msra.mxu0 0.0
    %476 = vmatprep.subr.mxu0 0.0
    %477 = vmatpush1.msra.mxu0 0.0
    %478 = vmatprep.subr.mxu0 0.0
    %479 = vmatpush1.msra.mxu0 0.0
    %480 = vmatprep.subr.mxu0 0.0
    %481 = vmatpush1.msra.mxu0 0.0
    %482 = vmatprep.subr.mxu0 0.0
    %483 = vmatpush1.msra.mxu0 0.0
    %484 = vmatprep.subr.mxu0 0.0
    %485 = vmatpush1.msra.mxu0 0.0
    %486 = vmatprep.subr.mxu0 0.0
    %487 = vmatpush1.msra.mxu0 0.0
    %488 = vmatprep.subr.mxu0 0.0
    %489 = vmatpush1.msra.mxu0 0.0
    %490 = vmatprep.subr.mxu0 0.0
    %491 = vmatpush1.msra.mxu0 0.0
    %492 = vmatprep.subr.mxu0 0.0
    %493 = vmatpush1.msra.mxu0 0.0
    %494 = vmatprep.subr.mxu0 0.0
    %495 = vmatpush1.msra.mxu0 0.0
    %496 = vmatprep.subr.mxu0 0.0
    %497 = vmatpush1.msra.mxu0 %v461
    %498 = vmatprep.subr.mxu0 0.0
    %499 = vmatpush2.msra.mxu0 0.0
    %500 = vmatprep.subr.mxu0 0.0
    %501 = vmatpush2.msra.mxu0 0.0
    %502 = vmatprep.subr.mxu0 0.0
    %503 = vmatpush2.msra.mxu0 0.0
    %504 = vmatprep.subr.mxu0 0.0
    %505 = vmatpush2.msra.mxu0 0.0
    %506 = vmatprep.subr.mxu0 0.0
    %507 = vmatpush2.msra.mxu0 0.0
    %508 = vmatprep.subr.mxu0 0.0
    %509 = vmatpush2.msra.mxu0 0.0
    %510 = vmatprep.subr.mxu0 0.0
    %511 = vmatpush2.msra.mxu0 0.0
    %512 = vmatprep.subr.mxu0 0.0
    %513 = vmatpush2.msra.mxu0 0.0
    %514 = vmatprep.subr.mxu0 0.0
    %515 = vmatpush2.msra.mxu0 0.0
    %516 = vmatprep.subr.mxu0 0.0
    %517 = vmatpush2.msra.mxu0 0.0
    %518 = vmatprep.subr.mxu0 0.0
    %519 = vmatpush2.msra.mxu0 0.0
    %520 = vmatprep.subr.mxu0 0.0
    %521 = vmatpush2.msra.mxu0 0.0
    %522 = vmatprep.subr.mxu0 0.0
    %523 = vmatpush2.msra.mxu0 0.0
    %524 = vmatprep.subr.mxu0 0.0
    %525 = vmatpush2.msra.mxu0 0.0
    %526 = vmatprep.subr.mxu0 0.0
    %527 = vmatpush2.msra.mxu0 0.0
    %528 = vmatprep.subr.mxu0 0.0
    %529 = vmatpush2.msra.mxu0 0.0
    %530 = vmatprep.mubr.f32.mxu0 0.0
    %531 = vmatmul.mubr.f32.gmra.mxu0 %v464
    %v532 = vpop.f32.mrf.mxu0
    %v533 = vadd.f32 0.0, %v532
    %v534 = vpop.f32.mrf.mxu0
    %535 = vdwg.mxu0
    %536 = vrot.lane.b32.xlu0 %v270, 64
    %v537 = vpop.permute.xlu0 %536
    %v540 = vsel %vm437, %v459, 0
    %542 = vmatprep.subr.mxu0 0.0
    %543 = vmatpush1.msra.mxu0 0.0
    %544 = vmatprep.subr.mxu0 0.0
    %545 = vmatpush1.msra.mxu0 0.0
    %546 = vmatprep.subr.mxu0 0.0
    %547 = vmatpush1.msra.mxu0 0.0
    %548 = vmatprep.subr.mxu0 0.0
    %549 = vmatpush1.msra.mxu0 0.0
    %550 = vmatprep.subr.mxu0 0.0
    %551 = vmatpush1.msra.mxu0 0.0
    %552 = vmatprep.subr.mxu0 0.0
    %553 = vmatpush1.msra.mxu0 0.0
    %554 = vmatprep.subr.mxu0 0.0
    %555 = vmatpush1.msra.mxu0 0.0
    %556 = vmatprep.subr.mxu0 0.0
    %557 = vmatpush1.msra.mxu0 0.0
    %558 = vmatprep.subr.mxu0 0.0
    %559 = vmatpush1.msra.mxu0 0.0
    %560 = vmatprep.subr.mxu0 0.0
    %561 = vmatpush1.msra.mxu0 0.0
    %562 = vmatprep.subr.mxu0 0.0
    %563 = vmatpush1.msra.mxu0 0.0
    %564 = vmatprep.subr.mxu0 0.0
    %565 = vmatpush1.msra.mxu0 0.0
    %566 = vmatprep.subr.mxu0 0.0
    %567 = vmatpush1.msra.mxu0 0.0
    %568 = vmatprep.subr.mxu0 0.0
    %569 = vmatpush1.msra.mxu0 0.0
    %570 = vmatprep.subr.mxu0 0.0
    %571 = vmatpush1.msra.mxu0 0.0
    %572 = vmatprep.subr.mxu0 0.0
    %573 = vmatpush1.msra.mxu0 %v537
    %574 = vmatprep.subr.mxu0 0.0
    %575 = vmatpush2.msra.mxu0 0.0
    %576 = vmatprep.subr.mxu0 0.0
    %577 = vmatpush2.msra.mxu0 0.0
    %578 = vmatprep.subr.mxu0 0.0
    %579 = vmatpush2.msra.mxu0 0.0
    %580 = vmatprep.subr.mxu0 0.0
    %581 = vmatpush2.msra.mxu0 0.0
    %582 = vmatprep.subr.mxu0 0.0
    %583 = vmatpush2.msra.mxu0 0.0
    %584 = vmatprep.subr.mxu0 0.0
    %585 = vmatpush2.msra.mxu0 0.0
    %586 = vmatprep.subr.mxu0 0.0
    %587 = vmatpush2.msra.mxu0 0.0
    %588 = vmatprep.subr.mxu0 0.0
    %589 = vmatpush2.msra.mxu0 0.0
    %590 = vmatprep.subr.mxu0 0.0
    %591 = vmatpush2.msra.mxu0 0.0
    %592 = vmatprep.subr.mxu0 0.0
    %593 = vmatpush2.msra.mxu0 0.0
    %594 = vmatprep.subr.mxu0 0.0
    %595 = vmatpush2.msra.mxu0 0.0
    %596 = vmatprep.subr.mxu0 0.0
    %597 = vmatpush2.msra.mxu0 0.0
    %598 = vmatprep.subr.mxu0 0.0
    %599 = vmatpush2.msra.mxu0 0.0
    %600 = vmatprep.subr.mxu0 0.0
    %601 = vmatpush2.msra.mxu0 0.0
    %602 = vmatprep.subr.mxu0 0.0
    %603 = vmatpush2.msra.mxu0 0.0
    %604 = vmatprep.subr.mxu0 0.0
    %605 = vmatpush2.msra.mxu0 0.0
    %606 = vmatprep.mubr.f32.mxu0 0.0
    %607 = vmatmul.mubr.f32.gmra.mxu0 %v540
    %v608 = vpop.f32.mrf.mxu0
    %v609 = vadd.f32 0.0, %v608
    %v610 = vpop.f32.mrf.mxu0
    %611 = vdwg.mxu0
    %v612 = vlaneseq
    %v613 = vshrl.u32 %v612, 7
    %v614 = vsub.s32 1, %v613
    %v615 = vrot.slane %v75, %v614
    %v617 = vsel %vm191, %v533, 0
    %v620 = vsel %vm191, %v609, 0
    %622 = vmatprep.subr.mxu0 0.0
    %623 = vmatpush1.msra.mxu0 0.0
    %624 = vmatprep.subr.mxu0 0.0
    %625 = vmatpush1.msra.mxu0 0.0
    %626 = vmatprep.subr.mxu0 0.0
    %627 = vmatpush1.msra.mxu0 0.0
    %628 = vmatprep.subr.mxu0 0.0
    %629 = vmatpush1.msra.mxu0 0.0
    %630 = vmatprep.subr.mxu0 0.0
    %631 = vmatpush1.msra.mxu0 0.0
    %632 = vmatprep.subr.mxu0 0.0
    %633 = vmatpush1.msra.mxu0 0.0
    %634 = vmatprep.subr.mxu0 0.0
    %635 = vmatpush1.msra.mxu0 0.0
    %636 = vmatprep.subr.mxu0 0.0
    %637 = vmatpush1.msra.mxu0 0.0
    %638 = vmatprep.subr.mxu0 0.0
    %639 = vmatpush1.msra.mxu0 0.0
    %640 = vmatprep.subr.mxu0 0.0
    %641 = vmatpush1.msra.mxu0 0.0
    %642 = vmatprep.subr.mxu0 0.0
    %643 = vmatpush1.msra.mxu0 0.0
    %644 = vmatprep.subr.mxu0 0.0
    %645 = vmatpush1.msra.mxu0 0.0
    %646 = vmatprep.subr.mxu0 0.0
    %647 = vmatpush1.msra.mxu0 %v53
    %648 = vmatprep.subr.mxu0 0.0
    %649 = vmatpush1.msra.mxu0 %v52
    %650 = vmatprep.subr.mxu0 0.0
    %651 = vmatpush1.msra.mxu0 %v51
    %652 = vmatprep.subr.mxu0 0.0
    %653 = vmatpush1.msra.mxu0 %v50
    %654 = vmatprep.subr.mxu0 0.0
    %655 = vmatpush2.msra.mxu0 0.0
    %656 = vmatprep.subr.mxu0 0.0
    %657 = vmatpush2.msra.mxu0 0.0
    %658 = vmatprep.subr.mxu0 0.0
    %659 = vmatpush2.msra.mxu0 0.0
    %660 = vmatprep.subr.mxu0 0.0
    %661 = vmatpush2.msra.mxu0 0.0
    %662 = vmatprep.subr.mxu0 0.0
    %663 = vmatpush2.msra.mxu0 0.0
    %664 = vmatprep.subr.mxu0 0.0
    %665 = vmatpush2.msra.mxu0 0.0
    %666 = vmatprep.subr.mxu0 0.0
    %667 = vmatpush2.msra.mxu0 0.0
    %668 = vmatprep.subr.mxu0 0.0
    %669 = vmatpush2.msra.mxu0 0.0
    %670 = vmatprep.subr.mxu0 0.0
    %671 = vmatpush2.msra.mxu0 0.0
    %672 = vmatprep.subr.mxu0 0.0
    %673 = vmatpush2.msra.mxu0 0.0
    %674 = vmatprep.subr.mxu0 0.0
    %675 = vmatpush2.msra.mxu0 0.0
    %676 = vmatprep.subr.mxu0 0.0
    %677 = vmatpush2.msra.mxu0 0.0
    %678 = vmatprep.subr.mxu0 0.0
    %679 = vmatpush2.msra.mxu0 0.0
    %680 = vmatprep.subr.mxu0 0.0
    %681 = vmatpush2.msra.mxu0 0.0
    %682 = vmatprep.subr.mxu0 0.0
    %683 = vmatpush2.msra.mxu0 0.0
    %684 = vmatprep.subr.mxu0 0.0
    %685 = vmatpush2.msra.mxu0 0.0
    %686 = vmatprep.mubr.f32.mxu0 0.0
    %687 = vmatmul.mubr.f32.gmra.mxu0 %v617
    %v688 = vpop.f32.mrf.mxu0
    %v689 = vadd.f32 %v615, %v688
    %v690 = vpop.f32.mrf.mxu0
    %691 = vmatprep.mubr.f32.mxu0 0.0
    %692 = vmatmul.mubr.f32.gmra.mxu0 %v620
    %v693 = vpop.f32.mrf.mxu0
    %v694 = vadd.f32 %v615, %v693
    %v695 = vpop.f32.mrf.mxu0
    %696 = vdwg.mxu0
    %v697 = vadd.f32 %v179, %v689
    %v698 = vadd.f32 %v184, %v694
    %v699 = vsel %vm191, %v697, 0.0
    %700 = vadd.xlane.f32.xlu0 %v699
    %v701 = vpop.xlane.xlu0 %700
    %v702 = vsel %vm191, %v698, 0.0
    %703 = vadd.xlane.f32.xlu0 %v702
    %v704 = vpop.xlane.xlu0 %703
    %v705 = vrcp.pop 32.0
    %v706 = vmul.f32 %v701, %v705
    %v707 = vmul.f32 %v704, %v705
    %v708 = vsub.f32 %v697, %v706
    %v709 = vsub.f32 %v698, %v707
    %v710 = vmul.f32 %v708, %v708
    %v711 = vmul.f32 %v709, %v709
    %v712 = vsel %vm191, %v710, 0.0
    %713 = vadd.xlane.f32.xlu0 %v712
    %v714 = vpop.xlane.xlu0 %713
    %v715 = vsel %vm191, %v711, 0.0
    %716 = vadd.xlane.f32.xlu0 %v715
    %v717 = vpop.xlane.xlu0 %716
    %v718 = vmul.f32 %v714, %v705
    %v719 = vmul.f32 %v717, %v705
    %v720 = vadd.f32 %v718, 1e-12
    %v721 = vadd.f32 %v719, 1e-12
    %v722 = vrsqrt.pop %v720
    %v723 = vrsqrt.pop %v721
    %v724 = vmul.f32 %v708, %v722
    %v725 = vmul.f32 %v709, %v723
    %v726 = vlaneseq
    %v727 = vshrl.u32 %v726, 7
    %v728 = vsub.s32 2, %v727
    %v729 = vrot.slane %v75, %v728
    %v730 = vmul.f32 %v724, %v729
    %v731 = vmul.f32 %v725, %v729
    %v732 = vlaneseq
    %v733 = vshrl.u32 %v732, 7
    %v734 = vsub.s32 3, %v733
    %v735 = vrot.slane %v75, %v734
    %v736 = vadd.f32 %v730, %v735
    %v737 = vadd.f32 %v731, %v735
    %v738 = vlaneseq
    %v739 = vshrl.u32 %v738, 7
    %v740 = vsub.s32 4, %v739
    %v741 = vrot.slane %v75, %v740
    %v743 = vsel %vm191, %v736, 0
    %v746 = vsel %vm191, %v737, 0
    %748 = vmatprep.subr.mxu0 0.0
    %749 = vmatpush1.msra.mxu0 0.0
    %750 = vmatprep.subr.mxu0 0.0
    %751 = vmatpush1.msra.mxu0 0.0
    %752 = vmatprep.subr.mxu0 0.0
    %753 = vmatpush1.msra.mxu0 0.0
    %754 = vmatprep.subr.mxu0 0.0
    %755 = vmatpush1.msra.mxu0 0.0
    %756 = vmatprep.subr.mxu0 0.0
    %757 = vmatpush1.msra.mxu0 0.0
    %758 = vmatprep.subr.mxu0 0.0
    %759 = vmatpush1.msra.mxu0 0.0
    %760 = vmatprep.subr.mxu0 0.0
    %761 = vmatpush1.msra.mxu0 0.0
    %762 = vmatprep.subr.mxu0 0.0
    %763 = vmatpush1.msra.mxu0 0.0
    %764 = vmatprep.subr.mxu0 0.0
    %765 = vmatpush1.msra.mxu0 0.0
    %766 = vmatprep.subr.mxu0 0.0
    %767 = vmatpush1.msra.mxu0 0.0
    %768 = vmatprep.subr.mxu0 0.0
    %769 = vmatpush1.msra.mxu0 0.0
    %770 = vmatprep.subr.mxu0 0.0
    %771 = vmatpush1.msra.mxu0 0.0
    %772 = vmatprep.subr.mxu0 0.0
    %773 = vmatpush1.msra.mxu0 %v57
    %774 = vmatprep.subr.mxu0 0.0
    %775 = vmatpush1.msra.mxu0 %v56
    %776 = vmatprep.subr.mxu0 0.0
    %777 = vmatpush1.msra.mxu0 %v55
    %778 = vmatprep.subr.mxu0 0.0
    %779 = vmatpush1.msra.mxu0 %v54
    %780 = vmatprep.subr.mxu0 0.0
    %781 = vmatpush2.msra.mxu0 0.0
    %782 = vmatprep.subr.mxu0 0.0
    %783 = vmatpush2.msra.mxu0 0.0
    %784 = vmatprep.subr.mxu0 0.0
    %785 = vmatpush2.msra.mxu0 0.0
    %786 = vmatprep.subr.mxu0 0.0
    %787 = vmatpush2.msra.mxu0 0.0
    %788 = vmatprep.subr.mxu0 0.0
    %789 = vmatpush2.msra.mxu0 0.0
    %790 = vmatprep.subr.mxu0 0.0
    %791 = vmatpush2.msra.mxu0 0.0
    %792 = vmatprep.subr.mxu0 0.0
    %793 = vmatpush2.msra.mxu0 0.0
    %794 = vmatprep.subr.mxu0 0.0
    %795 = vmatpush2.msra.mxu0 0.0
    %796 = vmatprep.subr.mxu0 0.0
    %797 = vmatpush2.msra.mxu0 0.0
    %798 = vmatprep.subr.mxu0 0.0
    %799 = vmatpush2.msra.mxu0 0.0
    %800 = vmatprep.subr.mxu0 0.0
    %801 = vmatpush2.msra.mxu0 0.0
    %802 = vmatprep.subr.mxu0 0.0
    %803 = vmatpush2.msra.mxu0 0.0
    %804 = vmatprep.subr.mxu0 0.0
    %805 = vmatpush2.msra.mxu0 0.0
    %806 = vmatprep.subr.mxu0 0.0
    %807 = vmatpush2.msra.mxu0 0.0
    %808 = vmatprep.subr.mxu0 0.0
    %809 = vmatpush2.msra.mxu0 0.0
    %810 = vmatprep.subr.mxu0 0.0
    %811 = vmatpush2.msra.mxu0 0.0
    %812 = vmatprep.mubr.f32.mxu0 0.0
    %813 = vmatmul.mubr.f32.gmra.mxu0 %v743
    %v814 = vpop.f32.mrf.mxu0
    %v815 = vadd.f32 %v741, %v814
    %v816 = vpop.f32.mrf.mxu0
    %817 = vmatprep.mubr.f32.mxu0 0.0
    %818 = vmatmul.mubr.f32.gmra.mxu0 %v746
    %v819 = vpop.f32.mrf.mxu0
    %v820 = vadd.f32 %v741, %v819
    %v821 = vpop.f32.mrf.mxu0
    %822 = vdwg.mxu0
    %v823 = vmax.f32 %v815, 0.0
    %v824 = vmax.f32 %v820, 0.0
    %v825 = vlaneseq
    %v826 = vshrl.u32 %v825, 7
    %v827 = vsub.s32 5, %v826
    %v828 = vrot.slane %v75, %v827
    %v830 = vsel %vm105, %v823, 0
    %v833 = vsel %vm105, %v824, 0
    %835 = vmatprep.subr.mxu0 0.0
    %836 = vmatpush1.msra.mxu0 0.0
    %837 = vmatprep.subr.mxu0 0.0
    %838 = vmatpush1.msra.mxu0 0.0
    %839 = vmatprep.subr.mxu0 0.0
    %840 = vmatpush1.msra.mxu0 0.0
    %841 = vmatprep.subr.mxu0 0.0
    %842 = vmatpush1.msra.mxu0 0.0
    %843 = vmatprep.subr.mxu0 0.0
    %844 = vmatpush1.msra.mxu0 0.0
    %845 = vmatprep.subr.mxu0 0.0
    %846 = vmatpush1.msra.mxu0 0.0
    %847 = vmatprep.subr.mxu0 0.0
    %848 = vmatpush1.msra.mxu0 0.0
    %849 = vmatprep.subr.mxu0 0.0
    %850 = vmatpush1.msra.mxu0 0.0
    %851 = vmatprep.subr.mxu0 0.0
    %852 = vmatpush1.msra.mxu0 %v65
    %853 = vmatprep.subr.mxu0 0.0
    %854 = vmatpush1.msra.mxu0 %v64
    %855 = vmatprep.subr.mxu0 0.0
    %856 = vmatpush1.msra.mxu0 %v63
    %857 = vmatprep.subr.mxu0 0.0
    %858 = vmatpush1.msra.mxu0 %v62
    %859 = vmatprep.subr.mxu0 0.0
    %860 = vmatpush1.msra.mxu0 %v61
    %861 = vmatprep.subr.mxu0 0.0
    %862 = vmatpush1.msra.mxu0 %v60
    %863 = vmatprep.subr.mxu0 0.0
    %864 = vmatpush1.msra.mxu0 %v59
    %865 = vmatprep.subr.mxu0 0.0
    %866 = vmatpush1.msra.mxu0 %v58
    %867 = vmatprep.subr.mxu0 0.0
    %868 = vmatpush2.msra.mxu0 0.0
    %869 = vmatprep.subr.mxu0 0.0
    %870 = vmatpush2.msra.mxu0 0.0
    %871 = vmatprep.subr.mxu0 0.0
    %872 = vmatpush2.msra.mxu0 0.0
    %873 = vmatprep.subr.mxu0 0.0
    %874 = vmatpush2.msra.mxu0 0.0
    %875 = vmatprep.subr.mxu0 0.0
    %876 = vmatpush2.msra.mxu0 0.0
    %877 = vmatprep.subr.mxu0 0.0
    %878 = vmatpush2.msra.mxu0 0.0
    %879 = vmatprep.subr.mxu0 0.0
    %880 = vmatpush2.msra.mxu0 0.0
    %881 = vmatprep.subr.mxu0 0.0
    %882 = vmatpush2.msra.mxu0 0.0
    %883 = vmatprep.subr.mxu0 0.0
    %884 = vmatpush2.msra.mxu0 0.0
    %885 = vmatprep.subr.mxu0 0.0
    %886 = vmatpush2.msra.mxu0 0.0
    %887 = vmatprep.subr.mxu0 0.0
    %888 = vmatpush2.msra.mxu0 0.0
    %889 = vmatprep.subr.mxu0 0.0
    %890 = vmatpush2.msra.mxu0 0.0
    %891 = vmatprep.subr.mxu0 0.0
    %892 = vmatpush2.msra.mxu0 0.0
    %893 = vmatprep.subr.mxu0 0.0
    %894 = vmatpush2.msra.mxu0 0.0
    %895 = vmatprep.subr.mxu0 0.0
    %896 = vmatpush2.msra.mxu0 0.0
    %897 = vmatprep.subr.mxu0 0.0
    %898 = vmatpush2.msra.mxu0 0.0
    %899 = vmatprep.mubr.f32.mxu0 0.0
    %900 = vmatmul.mubr.f32.gmra.mxu0 %v830
    %v901 = vpop.f32.mrf.mxu0
    %v902 = vadd.f32 %v828, %v901
    %v903 = vpop.f32.mrf.mxu0
    %904 = vmatprep.mubr.f32.mxu0 0.0
    %905 = vmatmul.mubr.f32.gmra.mxu0 %v833
    %v906 = vpop.f32.mrf.mxu0
    %v907 = vadd.f32 %v828, %v906
    %v908 = vpop.f32.mrf.mxu0
    %909 = vdwg.mxu0
    %v910 = vadd.f32 %v736, %v902
    %v911 = vadd.f32 %v737, %v907
    %v912 = vsel %vm191, %v910, 0.0
    %913 = vadd.xlane.f32.xlu0 %v912
    %v914 = vpop.xlane.xlu0 %913
    %v915 = vsel %vm191, %v911, 0.0
    %916 = vadd.xlane.f32.xlu0 %v915
    %v917 = vpop.xlane.xlu0 %916
    %v918 = vmul.f32 %v914, %v705
    %v919 = vmul.f32 %v917, %v705
    %v920 = vsub.f32 %v910, %v918
    %v921 = vsub.f32 %v911, %v919
    %v922 = vmul.f32 %v920, %v920
    %v923 = vmul.f32 %v921, %v921
    %v924 = vsel %vm191, %v922, 0.0
    %925 = vadd.xlane.f32.xlu0 %v924
    %v926 = vpop.xlane.xlu0 %925
    %v927 = vsel %vm191, %v923, 0.0
    %928 = vadd.xlane.f32.xlu0 %v927
    %v929 = vpop.xlane.xlu0 %928
    %v930 = vmul.f32 %v926, %v705
    %v931 = vmul.f32 %v929, %v705
    %v932 = vadd.f32 %v930, 1e-12
    %v933 = vadd.f32 %v931, 1e-12
    %v934 = vrsqrt.pop %v932
    %v935 = vrsqrt.pop %v933
    %v936 = vmul.f32 %v920, %v934
    %v937 = vmul.f32 %v921, %v935
    %v938 = vlaneseq
    %v939 = vshrl.u32 %v938, 7
    %v940 = vsub.s32 6, %v939
    %v941 = vrot.slane %v75, %v940
    %v942 = vmul.f32 %v936, %v941
    %v943 = vmul.f32 %v937, %v941
    %v944 = vlaneseq
    %v945 = vshrl.u32 %v944, 7
    %v946 = vsub.s32 7, %v945
    %v947 = vrot.slane %v75, %v946
    %v948 = vadd.f32 %v942, %v947
    %v949 = vadd.f32 %v943, %v947
    %v950 = vsel %vm77, %v84, 8
    %v951 = vcvt.s32.f32 %v950
    %vm952 = vcmask 58368
    %v953 = vsel %vm952, %v951, inf
    %954 = vmin.xlane.f32.xlu0 %v953
    %v955 = vpop.xlane.xlu0 %954
    %vm956 = vcmp.ge.f32.partialorder %v955, 8.0
    %v957 = vsel %vm956, 0.0, %v955
    %v958 = vcvt.f32.s32.to.zero.pseudo %v957
    %v959 = vlaneseq
    %v960 = vshrl.u32 %v959, 7
    %v961 = vmul.u32 %v960, 8
    %v962 = vadd.s32 %v961, %v958
    %vm963 = vcmp.eq.s32.totalorder %v84, %v962
    %v964 = vsel %vm963, 1, 0
    %v965 = vcvt.s32.f32 %v964
    %vm966 = vcmask 130048
    %v968 = vsel %vm966, %v965, 0
    %970 = vmatprep.subr.mxu0 0.0
    %971 = vmatpush1.msra.mxu0 0.0
    %972 = vmatprep.subr.mxu0 0.0
    %973 = vmatpush1.msra.mxu0 0.0
    %974 = vmatprep.subr.mxu0 0.0
    %975 = vmatpush1.msra.mxu0 0.0
    %976 = vmatprep.subr.mxu0 0.0
    %977 = vmatpush1.msra.mxu0 0.0
    %978 = vmatprep.subr.mxu0 0.0
    %979 = vmatpush1.msra.mxu0 0.0
    %980 = vmatprep.subr.mxu0 0.0
    %981 = vmatpush1.msra.mxu0 0.0
    %982 = vmatprep.subr.mxu0 0.0
    %983 = vmatpush1.msra.mxu0 0.0
    %984 = vmatprep.subr.mxu0 0.0
    %985 = vmatpush1.msra.mxu0 0.0
    %986 = vmatprep.subr.mxu0 0.0
    %987 = vmatpush1.msra.mxu0 0.0
    %988 = vmatprep.subr.mxu0 0.0
    %989 = vmatpush1.msra.mxu0 0.0
    %990 = vmatprep.subr.mxu0 0.0
    %991 = vmatpush1.msra.mxu0 0.0
    %992 = vmatprep.subr.mxu0 0.0
    %993 = vmatpush1.msra.mxu0 0.0
    %994 = vmatprep.subr.mxu0 0.0
    %995 = vmatpush1.msra.mxu0 0.0
    %996 = vmatprep.subr.mxu0 0.0
    %997 = vmatpush1.msra.mxu0 0.0
    %998 = vmatprep.subr.mxu0 0.0
    %999 = vmatpush1.msra.mxu0 %v949
    %1000 = vmatprep.subr.mxu0 0.0
    %1001 = vmatpush1.msra.mxu0 %v948
    %1002 = vmatprep.subr.mxu0 0.0
    %1003 = vmatpush2.msra.mxu0 0.0
    %1004 = vmatprep.subr.mxu0 0.0
    %1005 = vmatpush2.msra.mxu0 0.0
    %1006 = vmatprep.subr.mxu0 0.0
    %1007 = vmatpush2.msra.mxu0 0.0
    %1008 = vmatprep.subr.mxu0 0.0
    %1009 = vmatpush2.msra.mxu0 0.0
    %1010 = vmatprep.subr.mxu0 0.0
    %1011 = vmatpush2.msra.mxu0 0.0
    %1012 = vmatprep.subr.mxu0 0.0
    %1013 = vmatpush2.msra.mxu0 0.0
    %1014 = vmatprep.subr.mxu0 0.0
    %1015 = vmatpush2.msra.mxu0 0.0
    %1016 = vmatprep.subr.mxu0 0.0
    %1017 = vmatpush2.msra.mxu0 0.0
    %1018 = vmatprep.subr.mxu0 0.0
    %1019 = vmatpush2.msra.mxu0 0.0
    %1020 = vmatprep.subr.mxu0 0.0
    %1021 = vmatpush2.msra.mxu0 0.0
    %1022 = vmatprep.subr.mxu0 0.0
    %1023 = vmatpush2.msra.mxu0 0.0
    %1024 = vmatprep.subr.mxu0 0.0
    %1025 = vmatpush2.msra.mxu0 0.0
    %1026 = vmatprep.subr.mxu0 0.0
    %1027 = vmatpush2.msra.mxu0 0.0
    %1028 = vmatprep.subr.mxu0 0.0
    %1029 = vmatpush2.msra.mxu0 0.0
    %1030 = vmatprep.subr.mxu0 0.0
    %1031 = vmatpush2.msra.mxu0 0.0
    %1032 = vmatprep.subr.mxu0 0.0
    %1033 = vmatpush2.msra.mxu0 0.0
    %1034 = vmatprep.mubr.f32.mxu0 0.0
    %1035 = vmatmul.mubr.f32.gmra.mxu0 %v968
    %v1036 = vpop.f32.mrf.mxu0
    %v1037 = vadd.f32 0.0, %v1036
    %v1038 = vpop.f32.mrf.mxu0
    %1039 = vdwg.mxu0
    %v1041 = vrot.slane %v74, 6
    %vm1043 = vcmask 1041408
    %v1044 = vsel %vm1043, %v1037, %v1041
    %v1045 = vlaneseq
    %v1046 = vshrl.u32 %v1045, 7
    %v1047 = vsub.s32 0, %v1046
    %v1048 = vrot.slane %v76, %v1047
    %v1050 = vsel %vm191, %v1044, 0
    %1052 = vmatprep.subr.mxu0 0.0
    %1053 = vmatpush1.msra.mxu0 0.0
    %1054 = vmatprep.subr.mxu0 0.0
    %1055 = vmatpush1.msra.mxu0 0.0
    %1056 = vmatprep.subr.mxu0 0.0
    %1057 = vmatpush1.msra.mxu0 0.0
    %1058 = vmatprep.subr.mxu0 0.0
    %1059 = vmatpush1.msra.mxu0 0.0
    %1060 = vmatprep.subr.mxu0 0.0
    %1061 = vmatpush1.msra.mxu0 0.0
    %1062 = vmatprep.subr.mxu0 0.0
    %1063 = vmatpush1.msra.mxu0 0.0
    %1064 = vmatprep.subr.mxu0 0.0
    %1065 = vmatpush1.msra.mxu0 0.0
    %1066 = vmatprep.subr.mxu0 0.0
    %1067 = vmatpush1.msra.mxu0 0.0
    %1068 = vmatprep.subr.mxu0 0.0
    %1069 = vmatpush1.msra.mxu0 0.0
    %1070 = vmatprep.subr.mxu0 0.0
    %1071 = vmatpush1.msra.mxu0 0.0
    %1072 = vmatprep.subr.mxu0 0.0
    %1073 = vmatpush1.msra.mxu0 0.0
    %1074 = vmatprep.subr.mxu0 0.0
    %1075 = vmatpush1.msra.mxu0 0.0
    %1076 = vmatprep.subr.mxu0 0.0
    %1077 = vmatpush1.msra.mxu0 %v69
    %1078 = vmatprep.subr.mxu0 0.0
    %1079 = vmatpush1.msra.mxu0 %v68
    %1080 = vmatprep.subr.mxu0 0.0
    %1081 = vmatpush1.msra.mxu0 %v67
    %1082 = vmatprep.subr.mxu0 0.0
    %1083 = vmatpush1.msra.mxu0 %v66
    %1084 = vmatprep.subr.mxu0 0.0
    %1085 = vmatpush2.msra.mxu0 0.0
    %1086 = vmatprep.subr.mxu0 0.0
    %1087 = vmatpush2.msra.mxu0 0.0
    %1088 = vmatprep.subr.mxu0 0.0
    %1089 = vmatpush2.msra.mxu0 0.0
    %1090 = vmatprep.subr.mxu0 0.0
    %1091 = vmatpush2.msra.mxu0 0.0
    %1092 = vmatprep.subr.mxu0 0.0
    %1093 = vmatpush2.msra.mxu0 0.0
    %1094 = vmatprep.subr.mxu0 0.0
    %1095 = vmatpush2.msra.mxu0 0.0
    %1096 = vmatprep.subr.mxu0 0.0
    %1097 = vmatpush2.msra.mxu0 0.0
    %1098 = vmatprep.subr.mxu0 0.0
    %1099 = vmatpush2.msra.mxu0 0.0
    %1100 = vmatprep.subr.mxu0 0.0
    %1101 = vmatpush2.msra.mxu0 0.0
    %1102 = vmatprep.subr.mxu0 0.0
    %1103 = vmatpush2.msra.mxu0 0.0
    %1104 = vmatprep.subr.mxu0 0.0
    %1105 = vmatpush2.msra.mxu0 0.0
    %1106 = vmatprep.subr.mxu0 0.0
    %1107 = vmatpush2.msra.mxu0 0.0
    %1108 = vmatprep.subr.mxu0 0.0
    %1109 = vmatpush2.msra.mxu0 0.0
    %1110 = vmatprep.subr.mxu0 0.0
    %1111 = vmatpush2.msra.mxu0 0.0
    %1112 = vmatprep.subr.mxu0 0.0
    %1113 = vmatpush2.msra.mxu0 0.0
    %1114 = vmatprep.subr.mxu0 0.0
    %1115 = vmatpush2.msra.mxu0 0.0
    %1116 = vmatprep.mubr.f32.mxu0 0.0
    %1117 = vmatmul.mubr.f32.gmra.mxu0 %v1050
    %v1118 = vpop.f32.mrf.mxu0
    %v1119 = vadd.f32 %v1048, %v1118
    %v1120 = vpop.f32.mrf.mxu0
    %1121 = vdwg.mxu0
    %v1122 = vsel %vm191, %v1119, 0.0
    %1123 = vadd.xlane.f32.xlu0 %v1122
    %v1124 = vpop.xlane.xlu0 %1123
    %v1125 = vmul.f32 %v1124, %v705
    %v1126 = vsub.f32 %v1119, %v1125
    %v1127 = vmul.f32 %v1126, %v1126
    %v1128 = vsel %vm191, %v1127, 0.0
    %1129 = vadd.xlane.f32.xlu0 %v1128
    %v1130 = vpop.xlane.xlu0 %1129
    %v1131 = vmul.f32 %v1130, %v705
    %v1132 = vadd.f32 %v1131, 1e-05
    %v1133 = vrsqrt.pop %v1132
    %v1134 = vmul.f32 %v1126, %v1133
    %v1135 = vlaneseq
    %v1136 = vshrl.u32 %v1135, 7
    %v1137 = vsub.s32 1, %v1136
    %v1138 = vrot.slane %v76, %v1137
    %v1139 = vmul.f32 %v1134, %v1138
    %v1140 = vlaneseq
    %v1141 = vshrl.u32 %v1140, 7
    %v1142 = vsub.s32 2, %v1141
    %v1143 = vrot.slane %v76, %v1142
    %v1144 = vadd.f32 %v1139, %v1143
    %v1145 = vmax.f32 %v1144, 0.0
    %v1146 = vlaneseq
    %v1147 = vshrl.u32 %v1146, 7
    %v1148 = vsub.s32 3, %v1147
    %v1149 = vrot.slane %v76, %v1148
    %v1151 = vsel %vm191, %v1145, 0
    %1153 = vmatprep.subr.mxu0 0.0
    %1154 = vmatpush1.msra.mxu0 0.0
    %1155 = vmatprep.subr.mxu0 0.0
    %1156 = vmatpush1.msra.mxu0 0.0
    %1157 = vmatprep.subr.mxu0 0.0
    %1158 = vmatpush1.msra.mxu0 0.0
    %1159 = vmatprep.subr.mxu0 0.0
    %1160 = vmatpush1.msra.mxu0 0.0
    %1161 = vmatprep.subr.mxu0 0.0
    %1162 = vmatpush1.msra.mxu0 0.0
    %1163 = vmatprep.subr.mxu0 0.0
    %1164 = vmatpush1.msra.mxu0 0.0
    %1165 = vmatprep.subr.mxu0 0.0
    %1166 = vmatpush1.msra.mxu0 0.0
    %1167 = vmatprep.subr.mxu0 0.0
    %1168 = vmatpush1.msra.mxu0 0.0
    %1169 = vmatprep.subr.mxu0 0.0
    %1170 = vmatpush1.msra.mxu0 0.0
    %1171 = vmatprep.subr.mxu0 0.0
    %1172 = vmatpush1.msra.mxu0 0.0
    %1173 = vmatprep.subr.mxu0 0.0
    %1174 = vmatpush1.msra.mxu0 0.0
    %1175 = vmatprep.subr.mxu0 0.0
    %1176 = vmatpush1.msra.mxu0 0.0
    %1177 = vmatprep.subr.mxu0 0.0
    %1178 = vmatpush1.msra.mxu0 %v73
    %1179 = vmatprep.subr.mxu0 0.0
    %1180 = vmatpush1.msra.mxu0 %v72
    %1181 = vmatprep.subr.mxu0 0.0
    %1182 = vmatpush1.msra.mxu0 %v71
    %1183 = vmatprep.subr.mxu0 0.0
    %1184 = vmatpush1.msra.mxu0 %v70
    %1185 = vmatprep.subr.mxu0 0.0
    %1186 = vmatpush2.msra.mxu0 0.0
    %1187 = vmatprep.subr.mxu0 0.0
    %1188 = vmatpush2.msra.mxu0 0.0
    %1189 = vmatprep.subr.mxu0 0.0
    %1190 = vmatpush2.msra.mxu0 0.0
    %1191 = vmatprep.subr.mxu0 0.0
    %1192 = vmatpush2.msra.mxu0 0.0
    %1193 = vmatprep.subr.mxu0 0.0
    %1194 = vmatpush2.msra.mxu0 0.0
    %1195 = vmatprep.subr.mxu0 0.0
    %1196 = vmatpush2.msra.mxu0 0.0
    %1197 = vmatprep.subr.mxu0 0.0
    %1198 = vmatpush2.msra.mxu0 0.0
    %1199 = vmatprep.subr.mxu0 0.0
    %1200 = vmatpush2.msra.mxu0 0.0
    %1201 = vmatprep.subr.mxu0 0.0
    %1202 = vmatpush2.msra.mxu0 0.0
    %1203 = vmatprep.subr.mxu0 0.0
    %1204 = vmatpush2.msra.mxu0 0.0
    %1205 = vmatprep.subr.mxu0 0.0
    %1206 = vmatpush2.msra.mxu0 0.0
    %1207 = vmatprep.subr.mxu0 0.0
    %1208 = vmatpush2.msra.mxu0 0.0
    %1209 = vmatprep.subr.mxu0 0.0
    %1210 = vmatpush2.msra.mxu0 0.0
    %1211 = vmatprep.subr.mxu0 0.0
    %1212 = vmatpush2.msra.mxu0 0.0
    %1213 = vmatprep.subr.mxu0 0.0
    %1214 = vmatpush2.msra.mxu0 0.0
    %1215 = vmatprep.subr.mxu0 0.0
    %1216 = vmatpush2.msra.mxu0 0.0
    %1217 = vmatprep.mubr.f32.mxu0 0.0
    %1218 = vmatmul.mubr.f32.gmra.mxu0 %v1151
    %v1219 = vpop.f32.mrf.mxu0
    %v1220 = vadd.f32 %v1149, %v1219
    %v1221 = vpop.f32.mrf.mxu0
    %1222 = vdwg.mxu0
    %v1223 = vmul.f32 %v1220, %v1220
    %vm1224 = vcmask 123904
    %v1225 = vsel %vm1224, %v1223, 0.0
    %1226 = vadd.xlane.f32.xlu0 %v1225
    %v1227 = vpop.xlane.xlu0 %1226
    %v1228 = vmax.f32 %v1227, 1e-16
    %v1229 = vrsqrt.pop %v1228
    %vm1230 = vcmask 130050
    %v1231 = vsel %vm1230, %v1223, 0.0
    %1232 = vadd.xlane.f32.xlu0 %v1231
    %v1233 = vpop.xlane.xlu0 %1232
    %v1234 = vmax.f32 %v1233, 1e-16
    %v1235 = vrsqrt.pop %v1234
    %v1236 = vmul.f32 %v1220, %v1229
    %v1237 = vmul.f32 %v1220, %v1235
    %v1239 = vrot.slane %v1237, 2
    %v1241 = vsel %vm966, %v1236, 0
    %v1243 = vsel %vm966, %v1239, 0
    %1245 = vmatprep.subr.mxu0 0.0
    %1246 = vmatpush1.xpose.msra.mxu0 0.0
    %1247 = vmatprep.subr.mxu0 0.0
    %1248 = vmatpush1.xpose.msra.mxu0 0.0
    %1249 = vmatprep.subr.mxu0 0.0
    %1250 = vmatpush1.xpose.msra.mxu0 0.0
    %1251 = vmatprep.subr.mxu0 0.0
    %1252 = vmatpush1.xpose.msra.mxu0 0.0
    %1253 = vmatprep.subr.mxu0 0.0
    %1254 = vmatpush1.xpose.msra.mxu0 0.0
    %1255 = vmatprep.subr.mxu0 0.0
    %1256 = vmatpush1.xpose.msra.mxu0 0.0
    %1257 = vmatprep.subr.mxu0 0.0
    %1258 = vmatpush1.xpose.msra.mxu0 0.0
    %1259 = vmatprep.subr.mxu0 0.0
    %1260 = vmatpush1.xpose.msra.mxu0 0.0
    %1261 = vmatprep.subr.mxu0 0.0
    %1262 = vmatpush1.xpose.msra.mxu0 0.0
    %1263 = vmatprep.subr.mxu0 0.0
    %1264 = vmatpush1.xpose.msra.mxu0 0.0
    %1265 = vmatprep.subr.mxu0 0.0
    %1266 = vmatpush1.xpose.msra.mxu0 0.0
    %1267 = vmatprep.subr.mxu0 0.0
    %1268 = vmatpush1.xpose.msra.mxu0 0.0
    %1269 = vmatprep.subr.mxu0 0.0
    %1270 = vmatpush1.xpose.msra.mxu0 0.0
    %1271 = vmatprep.subr.mxu0 0.0
    %1272 = vmatpush1.xpose.msra.mxu0 0.0
    %1273 = vmatprep.subr.mxu0 0.0
    %1274 = vmatpush1.xpose.msra.mxu0 0.0
    %1275 = vmatprep.subr.mxu0 0.0
    %1276 = vmatpush1.xpose.msra.mxu0 %v1243
    %1277 = vmatprep.subr.mxu0 0.0
    %1278 = vmatpush2.xpose.msra.mxu0 0.0
    %1279 = vmatprep.subr.mxu0 0.0
    %1280 = vmatpush2.xpose.msra.mxu0 0.0
    %1281 = vmatprep.subr.mxu0 0.0
    %1282 = vmatpush2.xpose.msra.mxu0 0.0
    %1283 = vmatprep.subr.mxu0 0.0
    %1284 = vmatpush2.xpose.msra.mxu0 0.0
    %1285 = vmatprep.subr.mxu0 0.0
    %1286 = vmatpush2.xpose.msra.mxu0 0.0
    %1287 = vmatprep.subr.mxu0 0.0
    %1288 = vmatpush2.xpose.msra.mxu0 0.0
    %1289 = vmatprep.subr.mxu0 0.0
    %1290 = vmatpush2.xpose.msra.mxu0 0.0
    %1291 = vmatprep.subr.mxu0 0.0
    %1292 = vmatpush2.xpose.msra.mxu0 0.0
    %1293 = vmatprep.subr.mxu0 0.0
    %1294 = vmatpush2.xpose.msra.mxu0 0.0
    %1295 = vmatprep.subr.mxu0 0.0
    %1296 = vmatpush2.xpose.msra.mxu0 0.0
    %1297 = vmatprep.subr.mxu0 0.0
    %1298 = vmatpush2.xpose.msra.mxu0 0.0
    %1299 = vmatprep.subr.mxu0 0.0
    %1300 = vmatpush2.xpose.msra.mxu0 0.0
    %1301 = vmatprep.subr.mxu0 0.0
    %1302 = vmatpush2.xpose.msra.mxu0 0.0
    %1303 = vmatprep.subr.mxu0 0.0
    %1304 = vmatpush2.xpose.msra.mxu0 0.0
    %1305 = vmatprep.subr.mxu0 0.0
    %1306 = vmatpush2.xpose.msra.mxu0 0.0
    %1307 = vmatprep.subr.mxu0 0.0
    %1308 = vmatpush2.xpose.msra.mxu0 0.0
    %1309 = vmatprep.mubr.f32.mxu0 0.0
    %1310 = vmatmul.mubr.f32.gmra.mxu0 %v1241
    %v1311 = vpop.f32.mrf.mxu0
    %v1312 = vadd.f32 1.0, %v1311
    %v1313 = vpop.f32.mrf.mxu0
    %1314 = vdwg.mxu0
    %v1315 = vmul.f32 %v1312, 0.5
    %v1316 = vadd.f32 %v1315, 1e-08
    %1318 = vrot.lane.b32.xlu0 %v1220, 32
    %v1319 = vpop.permute.xlu0 %1318
    %1322 = vrot.lane.b32.xlu0 %v1119, 16
    %v1323 = vpop.permute.xlu0 %1322
    %1326 = vrot.lane.b32.xlu0 %v1316, 56
    %v1327 = vpop.permute.xlu0 %1326
    %v1329 = vsel %vm191, %v1037, %v1319
    %vm1330 = vcmask 392192
    %v1331 = vsel %vm1330, %v1329, %v1323
    %vm1332 = vcmask 441344
    %v1333 = vsel %vm1332, %v1331, 0.0
    %vm1334 = vcmask 457728
    %v1335 = vsel %vm1334, %v1333, %v1327
    %vm1336 = vcmask 506880
    %v1337 = vsel %vm1336, %v1335, 0.0
    %1338 = vst [vmem:[%s2] sm:$0x3] %v1337
    // Predicated region
    $region18: #{clmodel_forward.1} parent=1 // pred_check
      _
    $region19: #{clmodel_forward.1} parent=1 // pred_check_branch
      %1340 = sbr.rel (0) target = $region21
    $region20: #{clmodel_forward.1} parent=1 // pred_region
      _
    $region21: #{clmodel_forward.1} parent=1 // pred_fallthru
      _
    // Predicated region
    $region22: #{clmodel_forward.1} parent=1 // pred_check
      _
    $region23: #{clmodel_forward.1} parent=1 // pred_check_branch
      %1342 = sbr.rel (0) target = $region25
    $region24: #{clmodel_forward.1} parent=1 // pred_region
      _
    $region25: #{clmodel_forward.1} parent=1 // pred_fallthru
      _
    %1343 = vsyncpa [#allocation3], 1
    %1344 = vsyncpa [#allocation5], 1

</llo_original>
